<compile_context>
chip_gen: v7x
topology: tpu7x:2x2x1
jax: 0.10.0
libtpu: 0.0.40
codegen_flags: <defaults>
</compile_context>

<pallas_src>
import functools

import numpy as np
import jax
import jax.numpy as jnp
from jax.experimental import pallas as pl
from jax.experimental.pallas import tpu as pltpu


def _moe_top2_kernel(x_ref, wg_ref, bg_ref, w1_ref, b1_ref, w2_ref, b2_ref,
                     out_ref, imp_ref, gate_sc, *, num_experts, n_valid,
                     resident):
    # grid = (token_tiles, num_experts); expert axis is innermost / "arbitrary"
    i = pl.program_id(0)
    e = pl.program_id(1)
    tile_n = out_ref.shape[0]

    @pl.when(e == 0)
    def _gating_and_init():
        x = x_ref[...]                                               # [tn, d] f32
        logits = jnp.dot(x, wg_ref[...],
                         preferred_element_type=jnp.float32) + bg_ref[...]
        m = jnp.max(logits, axis=-1, keepdims=True)
        p = jnp.exp(logits - m)
        scores = p / jnp.sum(p, axis=-1, keepdims=True)              # [tn, E]

        # top-2 mask via two-pass max (O(E)).  Exact ties at the boundary may
        # keep extra experts (vanishingly rare for f32 softmax).
        m1 = jnp.max(scores, axis=-1, keepdims=True)
        rest = jnp.where(scores < m1, scores, -1.0)                  # scores >= 0
        m2 = jnp.max(rest, axis=-1, keepdims=True)
        top2 = scores >= m2

        if n_valid is not None:
            # mask zero-padded token rows out of importance / gating
            rows = jax.lax.broadcasted_iota(jnp.int32, (tile_n, 1), 0) + i * tile_n
            scores = jnp.where(rows < n_valid, scores, 0.0)

        gate_sc[...] = jnp.where(top2, scores, 0.0)
        # partial importance: softmax scores summed over this token tile
        imp_ref[...] = jnp.sum(scores, axis=0, keepdims=True)[None]
        out_ref[...] = jnp.zeros_like(out_ref)

    # expert `e` FFN on the whole tile (non-selected tokens have gate weight 0).
    # bf16 operands, f32 accumulation (MXU-native).
    ew = e if resident else 0
    x_bf = x_ref[...].astype(jnp.bfloat16)
    h = jnp.dot(x_bf, w1_ref[ew], preferred_element_type=jnp.float32) + b1_ref[ew]
    h = jnp.maximum(h, 0.0).astype(jnp.bfloat16)                     # ReLU
    y = jnp.dot(h, w2_ref[ew], preferred_element_type=jnp.float32) + b2_ref[ew]

    # per-token gate weight for expert e (extract lane e of the gate scratch)
    lane = jax.lax.broadcasted_iota(jnp.int32, gate_sc.shape, 1)
    w_e = jnp.sum(jnp.where(lane == e, gate_sc[...], 0.0),
                  axis=-1, keepdims=True)                            # [tn, 1]
    out_ref[...] += w_e * y


def _vmem_capacity_bytes():
    try:
        return int(pltpu.get_tpu_info().vmem_capacity_bytes)
    except Exception:
        return 64 * 1024 * 1024          # conservative (v7x per-TC VMEM)


def _choose_tile_n(n_tokens, requested):
    tn = max(8, min(int(requested), int(n_tokens)))
    tn = ((tn + 7) // 8) * 8                         # (8,128) sublane constraint
    # Large problems: make sure there are >= 2 token tiles so the "parallel"
    # grid axis can feed both TensorCores on v7x.
    if n_tokens >= 1024 and pl.cdiv(n_tokens, tn) < 2:
        tn = ((pl.cdiv(n_tokens, 2) + 7) // 8) * 8
    return tn


def _vmem_limit_bytes(tn, d, F, E, resident, resident_bytes, vmem_cap):
    est = 0
    est += 2 * tn * d * 4                    # x tile, double-buffered (f32)
    est += 2 * tn * d * 4                    # out tile, double-buffered (f32)
    est += tn * E * 4                        # gate scratch
    est += tn * F * 4 + tn * F * 2 + tn * d * 2   # h (f32 + bf16), bf16 x temp
    est += d * E * 4 + E * 4 + 2 * E * 4     # gate weights / bias / imp
    if resident:
        est += 2 * resident_bytes            # assume pipeline double-buffers
    else:
        est += 2 * (2 * d * F * 2 + (F + d) * 4)   # one expert, double-buffered
    limit = int(est * 1.3) + (4 << 20)
    return max(32 << 20, min(limit, int(vmem_cap * 0.9)))


def moe_feedforward_top2(x, wg, bg, w1, b1, w2, b2, *, tile_n=1024,
                         weight_resident_limit_bytes=None):
    """Eval-mode forward of MoEFeedForwardTop2.

    x : [B, T, d] ; wg: [d, E] ; bg: [E]
    w1: [E, d, F] ; b1: [E, F] ; w2: [E, F, d] ; b2: [E, d]
    returns (out [B, T, d] f32, load_loss scalar)
    """
    B, T, d = x.shape
    E = wg.shape[1]
    F = w1.shape[2]
    N = B * T

    tn = _choose_tile_n(N, tile_n)
    n_tiles = pl.cdiv(N, tn)
    n_pad = n_tiles * tn

    x2 = x.reshape(N, d).astype(jnp.float32)
    if n_pad != N:
        x2 = jnp.pad(x2, ((0, n_pad - N), (0, 0)))

    wg_f = wg.astype(jnp.float32)
    bg2 = bg.reshape(1, E).astype(jnp.float32)
    w1b = w1.astype(jnp.bfloat16)
    w2b = w2.astype(jnp.bfloat16)
    b1r = b1.reshape(E, 1, F).astype(jnp.float32)
    b2r = b2.reshape(E, 1, d).astype(jnp.float32)

    # Decide whether all experts' FFN weights can stay VMEM-resident.
    vmem_cap = _vmem_capacity_bytes()
    resident_bytes = 2 * E * d * F * 2 + E * (F + d) * 4       # bf16 W1/W2 + f32 biases
    if weight_resident_limit_bytes is None:
        weight_resident_limit_bytes = int(0.4 * vmem_cap)
    resident = (2 * resident_bytes) <= weight_resident_limit_bytes

    if resident:
        # Full-array blocks with constant index_map -> DMA'd from HBM once,
        # then indexed per expert inside the kernel with e = pl.program_id(1).
        w1_spec = pl.BlockSpec((E, d, F), lambda i, e: (0, 0, 0))
        b1_spec = pl.BlockSpec((E, 1, F), lambda i, e: (0, 0, 0))
        w2_spec = pl.BlockSpec((E, F, d), lambda i, e: (0, 0, 0))
        b2_spec = pl.BlockSpec((E, 1, d), lambda i, e: (0, 0, 0))
    else:
        # Fallback: stream one expert's weights per inner grid step.
        # TODO(synk): on v5e consider pipeline_mode=pl.Buffered(3) for these.
        w1_spec = pl.BlockSpec((1, d, F), lambda i, e: (e, 0, 0))
        b1_spec = pl.BlockSpec((1, 1, F), lambda i, e: (e, 0, 0))
        w2_spec = pl.BlockSpec((1, F, d), lambda i, e: (e, 0, 0))
        b2_spec = pl.BlockSpec((1, 1, d), lambda i, e: (e, 0, 0))

    vmem_limit = _vmem_limit_bytes(tn, d, F, E, resident, resident_bytes, vmem_cap)

    kernel = functools.partial(
        _moe_top2_kernel, num_experts=E,
        n_valid=(N if n_pad != N else None), resident=resident)

    out2, imp_part = pl.pallas_call(
        kernel,
        out_shape=(jax.ShapeDtypeStruct((n_pad, d), jnp.float32),
                   jax.ShapeDtypeStruct((n_tiles, 1, E), jnp.float32)),
        grid_spec=pltpu.PrefetchScalarGridSpec(
            num_scalar_prefetch=0,
            grid=(n_tiles, E),
            in_specs=[
                pl.BlockSpec((tn, d), lambda i, e: (i, 0)),         # x tile
                pl.BlockSpec((d, E), lambda i, e: (0, 0)),          # gate W (resident)
                pl.BlockSpec((1, E), lambda i, e: (0, 0)),          # gate b
                w1_spec, b1_spec, w2_spec, b2_spec,                 # expert weights
            ],
            out_specs=[
                pl.BlockSpec((tn, d), lambda i, e: (i, 0)),         # out (resident over e)
                pl.BlockSpec((1, 1, E), lambda i, e: (i, 0, 0)),    # partial importance
            ],
            scratch_shapes=[pltpu.VMEM((tn, E), jnp.float32)],      # top-2 gate weights
        ),
        compiler_params=pltpu.CompilerParams(
            dimension_semantics=("parallel", "arbitrary"),
            vmem_limit_bytes=vmem_limit),
    )(x2, wg_f, bg2, w1b, b1r, w2b, b2r)

    importance = imp_part.sum(axis=(0, 1))                          # [E]
    load_loss = E * jnp.sum(importance ** 2) / (jnp.sum(importance) ** 2 + 1e-10)
    return out2[:N].reshape(B, T, d), load_loss


def _init_params(key, d, F, E):
    ks = jax.random.split(key, 6)

    def u(k, shape, fan_in):
        bound = 1.0 / np.sqrt(fan_in)
        return jax.random.uniform(k, shape, jnp.float32, -bound, bound)

    wg = u(ks[0], (d, E), d)
    bg = u(ks[1], (E,), d)
    w1 = u(ks[2], (E, d, F), d)
    b1 = u(ks[3], (E, F), d)
    w2 = u(ks[4], (E, F, d), F)
    b2 = u(ks[5], (E, d), F)
    return wg, bg, w1, b1, w2, b2


def _reference(x, wg, bg, w1, b1, w2, b2):
    """Pure-JAX mirror of the PyTorch forward (eval mode), using top_k + gather."""
    E = wg.shape[1]
    hi = jax.lax.Precision.HIGHEST
    logits = jnp.einsum("btd,de->bte", x, wg, precision=hi) + bg
    scores = jax.nn.softmax(logits, axis=-1)
    importance = scores.sum(axis=(0, 1))
    load_loss = E * jnp.sum(importance ** 2) / (jnp.sum(importance) ** 2 + 1e-10)
    top2_s, top2_i = jax.lax.top_k(scores, 2)
    expert_out = []
    for e_idx in range(E):
        h = jax.nn.relu(jnp.einsum("btd,df->btf", x, w1[e_idx], precision=hi) + b1[e_idx])
        expert_out.append(jnp.einsum("btf,fd->btd", h, w2[e_idx], precision=hi) + b2[e_idx])
    expert_out = jnp.stack(expert_out, axis=2)                      # [B, T, E, d]
    out = jnp.zeros_like(x)
    for rank in range(2):
        idx = top2_i[..., rank]
        w = top2_s[..., rank]
        sel = jnp.take_along_axis(expert_out, idx[..., None, None], axis=2)[:, :, 0, :]
        out = out + w[..., None] * sel
    return out, load_loss


if __name__ == "__main__":
    B, T = 2, 64
    d_model, dim_ff, num_experts = 128, 256, 4

    key = jax.random.PRNGKey(0)
    kx, kp = jax.random.split(key)
    x = jax.random.normal(kx, (B, T, d_model), dtype=jnp.float32)
    wg, bg, w1, b1, w2, b2 = _init_params(kp, d_model, dim_ff, num_experts)

    ref_out, ref_loss = _reference(x, wg, bg, w1, b1, w2, b2)

    # 1) default path: VMEM-resident bf16 expert weights, large token tile
    out, load_loss = moe_feedforward_top2(x, wg, bg, w1, b1, w2, b2)
    out = jax.block_until_ready(out)
    load_loss = jax.block_until_ready(load_loss)
    assert out.shape == (B, T, d_model), out.shape
    max_err = float(np.max(np.abs(np.asarray(out) - np.asarray(ref_out))))
    assert np.allclose(np.asarray(out), np.asarray(ref_out), atol=2e-2, rtol=2e-2), max_err
    assert np.allclose(float(load_loss), float(ref_loss), atol=5e-4, rtol=5e-4), \
        (float(load_loss), float(ref_loss))

    # 2) streamed-weight fallback + non-divisible tile (exercises padding/masking)
    out_s, loss_s = moe_feedforward_top2(x, wg, bg, w1, b1, w2, b2,
                                         tile_n=48, weight_resident_limit_bytes=0)
    out_s = jax.block_until_ready(out_s)
    loss_s = jax.block_until_ready(loss_s)
    max_err_s = float(np.max(np.abs(np.asarray(out_s) - np.asarray(ref_out))))
    assert np.allclose(np.asarray(out_s), np.asarray(ref_out), atol=2e-2, rtol=2e-2), max_err_s
    assert np.allclose(float(loss_s), float(ref_loss), atol=5e-4, rtol=5e-4), \
        (float(loss_s), float(ref_loss))

    print("KERNEL_OK")
</pallas_src>

<mosaic_0001>
module attributes {stable_mosaic.version = 11 : i64} {
  func.func @_moe_top2_kernel(%arg0: i32, %arg1: i32, %arg2: memref<128x128xf32, #tpu.memory_space<vmem>>, %arg3: memref<128x4xf32, #tpu.memory_space<vmem>>, %arg4: memref<1x4xf32, #tpu.memory_space<vmem>>, %arg5: memref<4x128x256xbf16, #tpu.memory_space<vmem>>, %arg6: memref<4x1x256xf32, #tpu.memory_space<vmem>>, %arg7: memref<4x256x128xbf16, #tpu.memory_space<vmem>>, %arg8: memref<4x1x128xf32, #tpu.memory_space<vmem>>, %arg9: memref<128x128xf32, #tpu.memory_space<vmem>>, %arg10: memref<1x1x4xf32, #tpu.memory_space<vmem>>, %arg11: memref<128x4xf32, #tpu.memory_space<vmem>>) attributes {dimension_semantics = [#tpu.dimension_semantics<parallel>, #tpu.dimension_semantics<arbitrary>], iteration_bounds = array<i64: 1, 4>, scalar_prefetch = 0 : i64, scratch_operands = 1 : i64, tpu.core_type = #tpu.core_type<tc>, window_params = [{transform_indices = @transform_0, window_bounds = array<i64: 128, 128>}, {pipeline_mode = #tpu.pipeline_mode<synchronous>, transform_indices = @transform_1, window_bounds = array<i64: 128, 4>}, {pipeline_mode = #tpu.pipeline_mode<synchronous>, transform_indices = @transform_2, window_bounds = array<i64: 1, 4>}, {pipeline_mode = #tpu.pipeline_mode<synchronous>, transform_indices = @transform_3, window_bounds = array<i64: 4, 128, 256>}, {pipeline_mode = #tpu.pipeline_mode<synchronous>, transform_indices = @transform_4, window_bounds = array<i64: 4, 1, 256>}, {pipeline_mode = #tpu.pipeline_mode<synchronous>, transform_indices = @transform_5, window_bounds = array<i64: 4, 256, 128>}, {pipeline_mode = #tpu.pipeline_mode<synchronous>, transform_indices = @transform_6, window_bounds = array<i64: 4, 1, 128>}, {transform_indices = @transform_7, window_bounds = array<i64: 128, 128>}, {transform_indices = @transform_8, window_bounds = array<i64: 1, 1, 4>}]} {
    %c0_i32 = arith.constant 0 : i32
    %0 = arith.cmpi eq, %arg1, %c0_i32 : i32
    %1 = arith.extui %0 : i1 to i32
    %c0_i32_0 = arith.constant 0 : i32
    %2 = arith.cmpi ne, %1, %c0_i32_0 : i32
    scf.if %2 {
      %c0_20 = arith.constant 0 : index
      %c0_21 = arith.constant 0 : index
      %39 = vector.load %arg2[%c0_20, %c0_21] : memref<128x128xf32, #tpu.memory_space<vmem>>, vector<128x128xf32>
      %c0_22 = arith.constant 0 : index
      %c0_23 = arith.constant 0 : index
      %40 = vector.load %arg3[%c0_22, %c0_23] : memref<128x4xf32, #tpu.memory_space<vmem>>, vector<128x4xf32>
      %cst_24 = arith.constant dense<0.000000e+00> : vector<128x4xf32>
      %41 = tpu.matmul %39, %40, %cst_24 {dimension_numbers = #tpu.dot_dimension_numbers<[1], [0], [0], [1], [0, 0, 1, 1], [], []>} : vector<128x128xf32>, vector<128x4xf32>, vector<128x4xf32> -> vector<128x4xf32>
      %c0_25 = arith.constant 0 : index
      %c0_26 = arith.constant 0 : index
      %42 = vector.load %arg4[%c0_25, %c0_26] : memref<1x4xf32, #tpu.memory_space<vmem>>, vector<1x4xf32>
      %43 = vector.broadcast %42 : vector<1x4xf32> to vector<128x4xf32>
      %44 = arith.addf %41, %43 : vector<128x4xf32>
      %cst_27 = arith.constant dense<0xFF800000> : vector<128xf32>
      %45 = vector.multi_reduction <maximumf>, %44, %cst_27 [1] : vector<128x4xf32> to vector<128xf32>
      %46 = vector.shape_cast %45 : vector<128xf32> to vector<128x1xf32>
      %47 = vector.broadcast %46 : vector<128x1xf32> to vector<128x4xf32>
      %48 = arith.subf %44, %47 : vector<128x4xf32>
      %49 = math.exp %48 : vector<128x4xf32>
      %cst_28 = arith.constant dense<0.000000e+00> : vector<128xf32>
      %50 = vector.multi_reduction <add>, %49, %cst_28 [1] : vector<128x4xf32> to vector<128xf32>
      %51 = vector.shape_cast %50 : vector<128xf32> to vector<128x1xf32>
      %52 = vector.broadcast %51 : vector<128x1xf32> to vector<128x4xf32>
      %53 = arith.divf %49, %52 : vector<128x4xf32>
      %cst_29 = arith.constant dense<0xFF800000> : vector<128xf32>
      %54 = vector.multi_reduction <maximumf>, %53, %cst_29 [1] : vector<128x4xf32> to vector<128xf32>
      %55 = vector.shape_cast %54 : vector<128xf32> to vector<128x1xf32>
      %56 = vector.broadcast %55 : vector<128x1xf32> to vector<128x4xf32>
      %57 = arith.cmpf olt, %53, %56 : vector<128x4xf32>
      %cst_30 = arith.constant -1.000000e+00 : f32
      %58 = vector.broadcast %cst_30 : f32 to vector<128x4xf32>
      %59 = arith.select %57, %53, %58 : vector<128x4xi1>, vector<128x4xf32>
      %cst_31 = arith.constant dense<0xFF800000> : vector<128xf32>
      %60 = vector.multi_reduction <maximumf>, %59, %cst_31 [1] : vector<128x4xf32> to vector<128xf32>
      %61 = vector.shape_cast %60 : vector<128xf32> to vector<128x1xf32>
      %62 = vector.broadcast %61 : vector<128x1xf32> to vector<128x4xf32>
      %63 = arith.cmpf oge, %53, %62 : vector<128x4xf32>
      %cst_32 = arith.constant 0.000000e+00 : f32
      %64 = vector.broadcast %cst_32 : f32 to vector<128x4xf32>
      %65 = arith.select %63, %53, %64 : vector<128x4xi1>, vector<128x4xf32>
      %c0_33 = arith.constant 0 : index
      %c0_34 = arith.constant 0 : index
      %66 = vector.load %arg11[%c0_33, %c0_34] : memref<128x4xf32, #tpu.memory_space<vmem>>, vector<128x4xf32>
      tpu.vector_store %arg11[%c0_33, %c0_34], %65 {strides = array<i32>} : memref<128x4xf32, #tpu.memory_space<vmem>>, vector<128x4xf32>,
      %cst_35 = arith.constant dense<0.000000e+00> : vector<4xf32>
      %67 = vector.multi_reduction <add>, %53, %cst_35 [0] : vector<128x4xf32> to vector<4xf32>
      %68 = vector.shape_cast %67 : vector<4xf32> to vector<1x4xf32>
      %69 = vector.shape_cast %68 : vector<1x4xf32> to vector<1x1x4xf32>
      %c0_36 = arith.constant 0 : index
      %c0_37 = arith.constant 0 : index
      %c0_38 = arith.constant 0 : index
      %70 = vector.load %arg10[%c0_36, %c0_37, %c0_38] : memref<1x1x4xf32, #tpu.memory_space<vmem>>, vector<1x1x4xf32>
      tpu.vector_store %arg10[%c0_36, %c0_37, %c0_38], %69 {strides = array<i32>} : memref<1x1x4xf32, #tpu.memory_space<vmem>>, vector<1x1x4xf32>,
      %cst_39 = arith.constant 0.000000e+00 : f32
      %71 = vector.broadcast %cst_39 : f32 to vector<128x128xf32>
      %c0_40 = arith.constant 0 : index
      %c0_41 = arith.constant 0 : index
      %72 = vector.load %arg9[%c0_40, %c0_41] : memref<128x128xf32, #tpu.memory_space<vmem>>, vector<128x128xf32>
      tpu.vector_store %arg9[%c0_40, %c0_41], %71 {strides = array<i32>} : memref<128x128xf32, #tpu.memory_space<vmem>>, vector<128x128xf32>,
    } else {
    }
    %c0 = arith.constant 0 : index
    %c0_1 = arith.constant 0 : index
    %3 = vector.load %arg2[%c0, %c0_1] : memref<128x128xf32, #tpu.memory_space<vmem>>, vector<128x128xf32>
    %4 = arith.truncf %3 : vector<128x128xf32> to vector<128x128xbf16>
    %5 = arith.index_cast %arg1 : i32 to index
    %c0_2 = arith.constant 0 : index
    %c0_3 = arith.constant 0 : index
    %6 = vector.load %arg5[%5, %c0_2, %c0_3] : memref<4x128x256xbf16, #tpu.memory_space<vmem>>, vector<1x128x256xbf16>
    %7 = vector.shape_cast %6 : vector<1x128x256xbf16> to vector<128x256xbf16>
    %cst = arith.constant dense<0.000000e+00> : vector<128x256xf32>
    %8 = tpu.matmul %4, %7, %cst {dimension_numbers = #tpu.dot_dimension_numbers<[1], [0], [0], [1], [0, 0, 1, 1], [], []>} : vector<128x128xbf16>, vector<128x256xbf16>, vector<128x256xf32> -> vector<128x256xf32>
    %9 = arith.index_cast %arg1 : i32 to index
    %c0_4 = arith.constant 0 : index
    %c0_5 = arith.constant 0 : index
    %10 = vector.load %arg6[%9, %c0_4, %c0_5] : memref<4x1x256xf32, #tpu.memory_space<vmem>>, vector<1x1x256xf32>
    %11 = vector.shape_cast %10 : vector<1x1x256xf32> to vector<1x256xf32>
    %12 = vector.broadcast %11 : vector<1x256xf32> to vector<128x256xf32>
    %13 = arith.addf %8, %12 : vector<128x256xf32>
    %cst_6 = arith.constant 0.000000e+00 : f32
    %14 = vector.broadcast %cst_6 : f32 to vector<128x256xf32>
    %15 = arith.maximumf %13, %14 : vector<128x256xf32>
    %16 = arith.truncf %15 : vector<128x256xf32> to vector<128x256xbf16>
    %17 = arith.index_cast %arg1 : i32 to index
    %c0_7 = arith.constant 0 : index
    %c0_8 = arith.constant 0 : index
    %18 = vector.load %arg7[%17, %c0_7, %c0_8] : memref<4x256x128xbf16, #tpu.memory_space<vmem>>, vector<1x256x128xbf16>
    %19 = vector.shape_cast %18 : vector<1x256x128xbf16> to vector<256x128xbf16>
    %cst_9 = arith.constant dense<0.000000e+00> : vector<128x128xf32>
    %20 = tpu.matmul %16, %19, %cst_9 {dimension_numbers = #tpu.dot_dimension_numbers<[1], [0], [0], [1], [0, 0, 1, 1], [], []>} : vector<128x256xbf16>, vector<256x128xbf16>, vector<128x128xf32> -> vector<128x128xf32>
    %21 = arith.index_cast %arg1 : i32 to index
    %c0_10 = arith.constant 0 : index
    %c0_11 = arith.constant 0 : index
    %22 = vector.load %arg8[%21, %c0_10, %c0_11] : memref<4x1x128xf32, #tpu.memory_space<vmem>>, vector<1x1x128xf32>
    %23 = vector.shape_cast %22 : vector<1x1x128xf32> to vector<1x128xf32>
    %24 = vector.broadcast %23 : vector<1x128xf32> to vector<128x128xf32>
    %25 = arith.addf %20, %24 : vector<128x128xf32>
    %26 = tpu.iota {dimensions = array<i32: 1>} : vector<128x4xi32>
    %27 = vector.broadcast %arg1 : i32 to vector<128x4xi32>
    %28 = arith.cmpi eq, %26, %27 : vector<128x4xi32>
    %c0_12 = arith.constant 0 : index
    %c0_13 = arith.constant 0 : index
    %29 = vector.load %arg11[%c0_12, %c0_13] : memref<128x4xf32, #tpu.memory_space<vmem>>, vector<128x4xf32>
    %cst_14 = arith.constant 0.000000e+00 : f32
    %30 = vector.broadcast %cst_14 : f32 to vector<128x4xf32>
    %31 = arith.select %28, %29, %30 : vector<128x4xi1>, vector<128x4xf32>
    %cst_15 = arith.constant dense<0.000000e+00> : vector<128xf32>
    %32 = vector.multi_reduction <add>, %31, %cst_15 [1] : vector<128x4xf32> to vector<128xf32>
    %33 = vector.shape_cast %32 : vector<128xf32> to vector<128x1xf32>
    %c0_16 = arith.constant 0 : index
    %c0_17 = arith.constant 0 : index
    %34 = vector.load %arg9[%c0_16, %c0_17] : memref<128x128xf32, #tpu.memory_space<vmem>>, vector<128x128xf32>
    %35 = vector.broadcast %33 : vector<128x1xf32> to vector<128x128xf32>
    %36 = arith.mulf %35, %25 : vector<128x128xf32>
    %37 = arith.addf %34, %36 : vector<128x128xf32>
    %c0_18 = arith.constant 0 : index
    %c0_19 = arith.constant 0 : index
    %38 = vector.load %arg9[%c0_18, %c0_19] : memref<128x128xf32, #tpu.memory_space<vmem>>, vector<128x128xf32>
    tpu.vector_store %arg9[%c0_18, %c0_19], %37 {strides = array<i32>} : memref<128x128xf32, #tpu.memory_space<vmem>>, vector<128x128xf32>,
    return
  }
  func.func @transform_0(%arg0: i32, %arg1: i32) -> (i32, i32) {
    %c0_i32 = arith.constant 0 : i32
    %c0_i32_0 = arith.constant 0 : i32
    return %arg0, %c0_i32 : i32, i32
  }
  func.func @transform_1(%arg0: i32, %arg1: i32) -> (i32, i32) {
    %c0_i32 = arith.constant 0 : i32
    %c0_i32_0 = arith.constant 0 : i32
    %c0_i32_1 = arith.constant 0 : i32
    return %c0_i32, %c0_i32_0 : i32, i32
  }
  func.func @transform_2(%arg0: i32, %arg1: i32) -> (i32, i32) {
    %c0_i32 = arith.constant 0 : i32
    %c0_i32_0 = arith.constant 0 : i32
    %c0_i32_1 = arith.constant 0 : i32
    return %c0_i32, %c0_i32_0 : i32, i32
  }
  func.func @transform_3(%arg0: i32, %arg1: i32) -> (i32, i32, i32) {
    %c0_i32 = arith.constant 0 : i32
    %c0_i32_0 = arith.constant 0 : i32
    %c0_i32_1 = arith.constant 0 : i32
    %c0_i32_2 = arith.constant 0 : i32
    return %c0_i32, %c0_i32_0, %c0_i32_1 : i32, i32, i32
  }
  func.func @transform_4(%arg0: i32, %arg1: i32) -> (i32, i32, i32) {
    %c0_i32 = arith.constant 0 : i32
    %c0_i32_0 = arith.constant 0 : i32
    %c0_i32_1 = arith.constant 0 : i32
    %c0_i32_2 = arith.constant 0 : i32
    return %c0_i32, %c0_i32_0, %c0_i32_1 : i32, i32, i32
  }
  func.func @transform_5(%arg0: i32, %arg1: i32) -> (i32, i32, i32) {
    %c0_i32 = arith.constant 0 : i32
    %c0_i32_0 = arith.constant 0 : i32
    %c0_i32_1 = arith.constant 0 : i32
    %c0_i32_2 = arith.constant 0 : i32
    return %c0_i32, %c0_i32_0, %c0_i32_1 : i32, i32, i32
  }
  func.func @transform_6(%arg0: i32, %arg1: i32) -> (i32, i32, i32) {
    %c0_i32 = arith.constant 0 : i32
    %c0_i32_0 = arith.constant 0 : i32
    %c0_i32_1 = arith.constant 0 : i32
    %c0_i32_2 = arith.constant 0 : i32
    return %c0_i32, %c0_i32_0, %c0_i32_1 : i32, i32, i32
  }
  func.func @transform_7(%arg0: i32, %arg1: i32) -> (i32, i32) {
    %c0_i32 = arith.constant 0 : i32
    %c0_i32_0 = arith.constant 0 : i32
    return %arg0, %c0_i32 : i32, i32
  }
  func.func @transform_8(%arg0: i32, %arg1: i32) -> (i32, i32, i32) {
    %c0_i32 = arith.constant 0 : i32
    %c0_i32_0 = arith.constant 0 : i32
    %c0_i32_1 = arith.constant 0 : i32
    return %arg0, %c0_i32, %c0_i32_0 : i32, i32, i32
  }
}

</mosaic_0001>

<llo_original>
// kernel: tpu_custom_call.1
$region0: #{tpu_custom_call.1}
  #allocation0 [shape = 'u32[]', space=smem, size = 0x4, offset = 0x4, fixed_abs, tag = 'smem constant byte address 0x4 - core index']
  #allocation1 [shape = 'u32[144,128]{1,0:T(1,128)}', space=vmem, size = 0x12000, scoped, tag = 'internal scratch']
  #allocation2 [shape = 'f32[128,4]{1,0:T(8,128)}', space=vmem, size = 0x10000, scoped, tag = 'scratch operand']
  %s0 = inlined_call_operand.vmem [shape: f32[128,128], index: 0, kind: input, shape index: {}]
  %s1 = inlined_call_operand.vmem [shape: f32[128,4], index: 1, kind: input, shape index: {}]
  %s2 = inlined_call_operand.vmem [shape: f32[1,4], index: 2, kind: input, shape index: {}]
  %s3 = inlined_call_operand.hbm [shape: bf16[4,128,256], index: 3, kind: input, shape index: {}]
  %s4 = inlined_call_operand.vmem [shape: f32[4,1,256], index: 4, kind: input, shape index: {}]
  %s5 = inlined_call_operand.hbm [shape: bf16[4,256,128], index: 5, kind: input, shape index: {}]
  %s6 = inlined_call_operand.vmem [shape: f32[4,1,128], index: 6, kind: input, shape index: {}]
  %s7 = inlined_call_operand.hbm [shape: f32[128,128], index: 7, kind: output, shape index: {0}]
  %s8 = inlined_call_operand.hbm [shape: f32[1,1,4], index: 8, kind: output, shape index: {1}]
  %9 = xla_tuple %s7, %s8
  %s10 = sld [smem:[#allocation0]]
  $region81: #{tpu_custom_call.1} parent=0
    _
  %s12 = ssub.s32 1, %s10
  %s13 = scalar_select 0, %s12, %s10
  $region1: #{tpu_custom_call.1} parent=0
    #allocation3 [shape = 'u8[262144]{0}', space=vmem, size = 0x40000, scoped, tag = 'input window, operand 3, single buffered']
    #allocation4 [shape = 's32[2]{0}', space=sflag, size = 0x8, scoped, tag = 'scoped memory for tpu_custom_call.1']
    #allocation5 [shape = 's32[2]{0}', space=sflag, size = 0x8, scoped, tag = 'scoped memory for tpu_custom_call.1']
    #allocation6 [shape = 'u8[262144]{0}', space=vmem, size = 0x40000, scoped, tag = 'input window, operand 5, single buffered']
    #allocation7 [shape = 's32[1]{0}', space=sflag, size = 0x4, scoped, tag = 'scoped memory for tpu_custom_call.1']
    #allocation8 [shape = 'u8[65536]{0}', space=vmem, size = 0x10000, scoped, tag = 'output window, operand 0, single buffered']
    #allocation9 [shape = 'u8[512]{0}', space=vmem, size = 0x400, scoped, tag = 'output window, operand 1, single buffered']
    #allocation10 [shape = 's32[1]{0}', space=sflag, size = 0x4, scoped, tag = 'scoped memory for tpu_custom_call.1']
    %14 = vsyncpa [#allocation4], 0
    %15 = vsyncpa [#allocation7], 0
    %16 = vsyncpa [#allocation5], 0
    %17 = vsyncpa [#allocation10], 0
    loop: start=0, step=1, limit=6
    $region2: #{tpu_custom_call.1} parent=1 // loop_pre_header
      _
    $region3: #{tpu_custom_call.1} parent=1 // loop_header
      %s19 = sphi 0, %s23
      %p20 = scmp.ge.s32.totalorder %s19, 6
      %s26 = sphi 0, %s38
      %s27 = sphi 0, %s34
      %s28 = sphi 0, %s26
      %s29 = sphi 0, %s27
      %s30 = sphi 0, %s28
      %s31 = sphi 0, %s29
      %s41 = sphi 0, %s43
      %s44 = sphi 0, %s41
      %s45 = sphi 0, %s44
      %s61 = sphi 0, %s45
      %s65 = sphi 0, %s65
      %s67 = sphi 0, %s65
      %s68 = sphi 0, %s67
      %s82 = sphi 0, %s68
      %s86 = sphi 0, %s86
      %s88 = sphi 0, %s86
      %s89 = sphi 0, %s88
      %s103 = sphi 0, %s89
      %s107 = sphi 0, %s107
      %s109 = sphi 0, %s107
      %s110 = sphi 0, %s109
      %s124 = sphi 0, %s110
      %s128 = sphi 0, %s128
      %s130 = sphi 0, %s128
      %s131 = sphi 0, %s130
      %s145 = sphi 0, %s131
      %s149 = sphi 0, %s149
      %s151 = sphi 0, %s149
      %s152 = sphi 0, %s151
      %s166 = sphi 0, %s152
      %s170 = sphi 0, %s170
      %s172 = sphi 0, %s170
      %s173 = sphi 0, %s172
      %s187 = sphi 0, %s173
      %s193 = sphi 0, %s195
      %s196 = sphi 0, %s193
      %s197 = sphi 0, %s196
      %s213 = sphi 0, %s197
      %s219 = sphi 0, %s221
      %s222 = sphi 0, %s219
      %s223 = sphi 0, %s222
      %s239 = sphi 0, %s223
    $region4: #{tpu_custom_call.1} parent=1 // loop_header_branch
      %22 = sbr.rel (%p20) target = $region8
    $region5: #{tpu_custom_call.1} parent=1 // loop_body
      %s24 = ssub.s32 %s19, 1
      %s25 = ssub.s32 %s19, 2
      %s32 = sadd.s32 1, %s27
      %p33 = scmp.ge.s32.totalorder %s32, 4
      %s34 = scalar_select %p33, 0, %s32
      %s35 = sadd.s32 1, %s26
      %s36 = scalar_select %p33, %s35, %s26
      %p37 = scmp.ge.s32.totalorder %s36, 1
      %s38 = scalar_select %p37, 0, %s36
      %s39 = ssub.s32 %s26, %s38
      %p40 = scmp.eq.s32.totalorder %s39, 0
      %s42 = sadd.s32 %s41, 1
      %s43 = scalar_select %p40, %s41, %s42
      %p46 = pneg %p40
      %p47 = scmp.eq.s32.totalorder %s19, 3
      %p48 = por %p46, %p47
      %p49 = scmp.ne.s32.totalorder %s41, %s44
      %p50 = scmp.eq.s32.totalorder %s19, 0
      %p51 = por %p49, %p50
      %p52 = scmp.ne.s32.totalorder %s41, %s44
      %p53 = scmp.eq.s32.totalorder %s24, 3
      %p54 = por %p52, %p53
      %p55 = scmp.ne.s32.totalorder %s44, %s45
      %p56 = scmp.eq.s32.totalorder %s24, 0
      %p57 = por %p55, %p56
      %p58 = scmp.ne.s32.totalorder %s44, %s45
      %p59 = scmp.eq.s32.totalorder %s25, 3
      %p60 = por %p58, %p59
      %p62 = scmp.ne.s32.totalorder %s45, %s61
      %p63 = scmp.eq.s32.totalorder %s25, 0
      %p64 = por %p62, %p63
      %s66 = sadd.s32 %s65, 1
      %p69 = scmp.eq.s32.totalorder %s19, 3
      %p70 = scmp.ne.s32.totalorder %s65, %s67
      %p71 = scmp.eq.s32.totalorder %s19, 0
      %p72 = por %p70, %p71
      %p73 = scmp.ne.s32.totalorder %s65, %s67
      %p74 = scmp.eq.s32.totalorder %s24, 3
      %p75 = por %p73, %p74
      %p76 = scmp.ne.s32.totalorder %s67, %s68
      %p77 = scmp.eq.s32.totalorder %s24, 0
      %p78 = por %p76, %p77
      %p79 = scmp.ne.s32.totalorder %s67, %s68
      %p80 = scmp.eq.s32.totalorder %s25, 3
      %p81 = por %p79, %p80
      %p83 = scmp.ne.s32.totalorder %s68, %s82
      %p84 = scmp.eq.s32.totalorder %s25, 0
      %p85 = por %p83, %p84
      %s87 = sadd.s32 %s86, 1
      %p90 = scmp.eq.s32.totalorder %s19, 3
      %p91 = scmp.ne.s32.totalorder %s86, %s88
      %p92 = scmp.eq.s32.totalorder %s19, 0
      %p93 = por %p91, %p92
      %p94 = scmp.ne.s32.totalorder %s86, %s88
      %p95 = scmp.eq.s32.totalorder %s24, 3
      %p96 = por %p94, %p95
      %p97 = scmp.ne.s32.totalorder %s88, %s89
      %p98 = scmp.eq.s32.totalorder %s24, 0
      %p99 = por %p97, %p98
      %p100 = scmp.ne.s32.totalorder %s88, %s89
      %p101 = scmp.eq.s32.totalorder %s25, 3
      %p102 = por %p100, %p101
      %p104 = scmp.ne.s32.totalorder %s89, %s103
      %p105 = scmp.eq.s32.totalorder %s25, 0
      %p106 = por %p104, %p105
      %s108 = sadd.s32 %s107, 1
      %p111 = scmp.eq.s32.totalorder %s19, 3
      %p112 = scmp.ne.s32.totalorder %s107, %s109
      %p113 = scmp.eq.s32.totalorder %s19, 0
      %p114 = por %p112, %p113
      %p115 = scmp.ne.s32.totalorder %s107, %s109
      %p116 = scmp.eq.s32.totalorder %s24, 3
      %p117 = por %p115, %p116
      %p118 = scmp.ne.s32.totalorder %s109, %s110
      %p119 = scmp.eq.s32.totalorder %s24, 0
      %p120 = por %p118, %p119
      %p121 = scmp.ne.s32.totalorder %s109, %s110
      %p122 = scmp.eq.s32.totalorder %s25, 3
      %p123 = por %p121, %p122
      %p125 = scmp.ne.s32.totalorder %s110, %s124
      %p126 = scmp.eq.s32.totalorder %s25, 0
      %p127 = por %p125, %p126
      %s129 = sadd.s32 %s128, 1
      %p132 = scmp.eq.s32.totalorder %s19, 3
      %p133 = scmp.ne.s32.totalorder %s128, %s130
      %p134 = scmp.eq.s32.totalorder %s19, 0
      %p135 = por %p133, %p134
      %p136 = scmp.ne.s32.totalorder %s128, %s130
      %p137 = scmp.eq.s32.totalorder %s24, 3
      %p138 = por %p136, %p137
      %p139 = scmp.ne.s32.totalorder %s130, %s131
      %p140 = scmp.eq.s32.totalorder %s24, 0
      %p141 = por %p139, %p140
      %p142 = scmp.ne.s32.totalorder %s130, %s131
      %p143 = scmp.eq.s32.totalorder %s25, 3
      %p144 = por %p142, %p143
      %p146 = scmp.ne.s32.totalorder %s131, %s145
      %p147 = scmp.eq.s32.totalorder %s25, 0
      %p148 = por %p146, %p147
      %s150 = sadd.s32 %s149, 1
      %p153 = scmp.eq.s32.totalorder %s19, 3
      %p154 = scmp.ne.s32.totalorder %s149, %s151
      %p155 = scmp.eq.s32.totalorder %s19, 0
      %p156 = por %p154, %p155
      %p157 = scmp.ne.s32.totalorder %s149, %s151
      %p158 = scmp.eq.s32.totalorder %s24, 3
      %p159 = por %p157, %p158
      %p160 = scmp.ne.s32.totalorder %s151, %s152
      %p161 = scmp.eq.s32.totalorder %s24, 0
      %p162 = por %p160, %p161
      %p163 = scmp.ne.s32.totalorder %s151, %s152
      %p164 = scmp.eq.s32.totalorder %s25, 3
      %p165 = por %p163, %p164
      %p167 = scmp.ne.s32.totalorder %s152, %s166
      %p168 = scmp.eq.s32.totalorder %s25, 0
      %p169 = por %p167, %p168
      %s171 = sadd.s32 %s170, 1
      %p174 = scmp.eq.s32.totalorder %s19, 3
      %p175 = scmp.ne.s32.totalorder %s170, %s172
      %p176 = scmp.eq.s32.totalorder %s19, 0
      %p177 = por %p175, %p176
      %p178 = scmp.ne.s32.totalorder %s170, %s172
      %p179 = scmp.eq.s32.totalorder %s24, 3
      %p180 = por %p178, %p179
      %p181 = scmp.ne.s32.totalorder %s172, %s173
      %p182 = scmp.eq.s32.totalorder %s24, 0
      %p183 = por %p181, %p182
      %p184 = scmp.ne.s32.totalorder %s172, %s173
      %p185 = scmp.eq.s32.totalorder %s25, 3
      %p186 = por %p184, %p185
      %p188 = scmp.ne.s32.totalorder %s173, %s187
      %p189 = scmp.eq.s32.totalorder %s25, 0
      %p190 = por %p188, %p189
      %s191 = ssub.s32 %s26, %s38
      %p192 = scmp.eq.s32.totalorder %s191, 0
      %s194 = sadd.s32 %s193, 1
      %s195 = scalar_select %p192, %s193, %s194
      %p198 = pneg %p192
      %p199 = scmp.eq.s32.totalorder %s19, 3
      %p200 = por %p198, %p199
      %p201 = scmp.ne.s32.totalorder %s193, %s196
      %p202 = scmp.eq.s32.totalorder %s19, 0
      %p203 = por %p201, %p202
      %p204 = scmp.ne.s32.totalorder %s193, %s196
      %p205 = scmp.eq.s32.totalorder %s24, 3
      %p206 = por %p204, %p205
      %p207 = scmp.ne.s32.totalorder %s196, %s197
      %p208 = scmp.eq.s32.totalorder %s24, 0
      %p209 = por %p207, %p208
      %p210 = scmp.ne.s32.totalorder %s196, %s197
      %p211 = scmp.eq.s32.totalorder %s25, 3
      %p212 = por %p210, %p211
      %p214 = scmp.ne.s32.totalorder %s197, %s213
      %p215 = scmp.eq.s32.totalorder %s25, 0
      %p216 = por %p214, %p215
      %s217 = ssub.s32 %s26, %s38
      %p218 = scmp.eq.s32.totalorder %s217, 0
      %s220 = sadd.s32 %s219, 1
      %s221 = scalar_select %p218, %s219, %s220
      %p224 = pneg %p218
      %p225 = scmp.eq.s32.totalorder %s19, 3
      %p226 = por %p224, %p225
      %p227 = scmp.ne.s32.totalorder %s219, %s222
      %p228 = scmp.eq.s32.totalorder %s19, 0
      %p229 = por %p227, %p228
      %p230 = scmp.ne.s32.totalorder %s219, %s222
      %p231 = scmp.eq.s32.totalorder %s24, 3
      %p232 = por %p230, %p231
      %p233 = scmp.ne.s32.totalorder %s222, %s223
      %p234 = scmp.eq.s32.totalorder %s24, 0
      %p235 = por %p233, %p234
      %p236 = scmp.ne.s32.totalorder %s222, %s223
      %p237 = scmp.eq.s32.totalorder %s25, 3
      %p238 = por %p236, %p237
      %p240 = scmp.ne.s32.totalorder %s223, %s239
      %p241 = scmp.eq.s32.totalorder %s25, 0
      %p242 = por %p240, %p241
      %p243 = scmp.le.s32.totalorder 1, %s19
      %p244 = scmp.lt.s32.totalorder %s19, 5
      %p245 = pnand %p243, %p244
      %p246 = pneg %p245
      // Predicated region
      $region9: #{tpu_custom_call.1} parent=5 // pred_check
        _
      $region10: #{tpu_custom_call.1} parent=5 // pred_check_branch
        %248 = sbr.rel (%p245) target = $region12
      $region11: #{tpu_custom_call.1} parent=5 // pred_region
        %s249 = ssub.s32 %s19, 1
        // Predicated region
        $region13: #{tpu_custom_call.1} parent=11 // pred_check
          %p250 = pneg %p57
        $region14: #{tpu_custom_call.1} parent=11 // pred_check_branch
          %252 = sbr.rel (%p250) target = $region16
        $region15: #{tpu_custom_call.1} parent=11 // pred_region
          %s253 = smul.u32 16, %s28
          %p254 = scmp.lt.s32.totalorder %s253, 15
          %s255 = scalar_select %p254, %s253, 15
          %s256 = smul.addr %s255, 8
          %s257 = scalar_lea.vmem %s0, %s256
          %s258 = smul.u32 16, %s28
        $region16: #{tpu_custom_call.1} parent=11 // pred_fallthru
          _
        // Predicated region
        $region17: #{tpu_custom_call.1} parent=11 // pred_check
          %p259 = pneg %p78
        $region18: #{tpu_custom_call.1} parent=11 // pred_check_branch
          %261 = sbr.rel (%p259) target = $region20
        $region19: #{tpu_custom_call.1} parent=11 // pred_region
          _
        $region20: #{tpu_custom_call.1} parent=11 // pred_fallthru
          _
        // Predicated region
        $region21: #{tpu_custom_call.1} parent=11 // pred_check
          %p262 = pneg %p99
        $region22: #{tpu_custom_call.1} parent=11 // pred_check_branch
          %264 = sbr.rel (%p262) target = $region24
        $region23: #{tpu_custom_call.1} parent=11 // pred_region
          _
        $region24: #{tpu_custom_call.1} parent=11 // pred_fallthru
          _
        // Predicated region
        $region25: #{tpu_custom_call.1} parent=11 // pred_check
          %p265 = pneg %p120
        $region26: #{tpu_custom_call.1} parent=11 // pred_check_branch
          %267 = sbr.rel (%p265) target = $region28
        $region27: #{tpu_custom_call.1} parent=11 // pred_region
          %s269 = ssub.s32 8192, 8192
          %270 = vsyncadd [#allocation4], %s269
          %s271 = sshll.u32 [#allocation3], 4
          %s272 = int_to_ptr.vmem [resolvable:$true] %s271
          %277 = dma.hbm_to_vmem [thread:$0]  %s3, 8192, %s272, [#allocation4], 128, 128, 8
        $region28: #{tpu_custom_call.1} parent=11 // pred_fallthru
          _
        // Predicated region
        $region29: #{tpu_custom_call.1} parent=11 // pred_check
          %p278 = pneg %p141
        $region30: #{tpu_custom_call.1} parent=11 // pred_check_branch
          %280 = sbr.rel (%p278) target = $region32
        $region31: #{tpu_custom_call.1} parent=11 // pred_region
          _
        $region32: #{tpu_custom_call.1} parent=11 // pred_fallthru
          _
        // Predicated region
        $region33: #{tpu_custom_call.1} parent=11 // pred_check
          %p281 = pneg %p162
        $region34: #{tpu_custom_call.1} parent=11 // pred_check_branch
          %283 = sbr.rel (%p281) target = $region36
        $region35: #{tpu_custom_call.1} parent=11 // pred_region
          %s285 = ssub.s32 8192, 8192
          %286 = vsyncadd [#allocation7], %s285
          %s287 = sshll.u32 [#allocation6], 4
          %s288 = int_to_ptr.vmem [resolvable:$true] %s287
          %293 = dma.hbm_to_vmem [thread:$0]  %s5, 8192, %s288, [#allocation7], 64, 64, 4
        $region36: #{tpu_custom_call.1} parent=11 // pred_fallthru
          _
        // Predicated region
        $region37: #{tpu_custom_call.1} parent=11 // pred_check
          %p294 = pneg %p183
        $region38: #{tpu_custom_call.1} parent=11 // pred_check_branch
          %296 = sbr.rel (%p294) target = $region40
        $region39: #{tpu_custom_call.1} parent=11 // pred_region
          _
        $region40: #{tpu_custom_call.1} parent=11 // pred_fallthru
          _
      $region12: #{tpu_custom_call.1} parent=5 // pred_fallthru
        _
      %p297 = scmp.lt.s32.totalorder %s19, 4
      // Predicated region
      $region41: #{tpu_custom_call.1} parent=5 // pred_check
        %p298 = pneg %p297
      $region42: #{tpu_custom_call.1} parent=5 // pred_check_branch
        %300 = sbr.rel (%p298) target = $region44
      $region43: #{tpu_custom_call.1} parent=5 // pred_region
        _
      $region44: #{tpu_custom_call.1} parent=5 // pred_fallthru
        _
      %p301 = scmp.le.s32.totalorder 1, %s19
      %p302 = scmp.lt.s32.totalorder %s19, 5
      %p303 = pnand %p301, %p302
      %p304 = pneg %p303
      // Predicated region
      $region45: #{tpu_custom_call.1} parent=5 // pred_check
        _
      $region46: #{tpu_custom_call.1} parent=5 // pred_check_branch
        %306 = sbr.rel (%p303) target = $region48
      $region47: #{tpu_custom_call.1} parent=5 // pred_region
        %s307 = ssub.s32 %s19, 1
        // Predicated region
        $region49: #{tpu_custom_call.1} parent=47 // pred_check
          %p308 = pneg %p120
        $region50: #{tpu_custom_call.1} parent=47 // pred_check_branch
          %310 = sbr.rel (%p308) target = $region52
        $region51: #{tpu_custom_call.1} parent=47 // pred_region
          %311 = dma.done [#allocation4], 8192
        $region52: #{tpu_custom_call.1} parent=47 // pred_fallthru
          _
        // Predicated region
        $region53: #{tpu_custom_call.1} parent=47 // pred_check
          %p312 = pneg %p162
        $region54: #{tpu_custom_call.1} parent=47 // pred_check_branch
          %314 = sbr.rel (%p312) target = $region56
        $region55: #{tpu_custom_call.1} parent=47 // pred_region
          %315 = dma.done [#allocation7], 8192
        $region56: #{tpu_custom_call.1} parent=47 // pred_fallthru
          _
        %s316 = smul.u32 16, %s28
        %p317 = scmp.lt.s32.totalorder %s316, 15
        %s318 = scalar_select %p317, %s316, 15
        %s319 = smul.addr %s318, 8
        %s320 = scalar_lea.vmem %s0, %s319
        %p321 = pneg %p57
        %p322 = pneg %p54
        %p323 = pneg %p78
        %p324 = pneg %p75
        %p325 = pneg %p99
        %p326 = pneg %p96
        %p327 = pneg %p120
        %p328 = pneg %p117
        %p329 = pneg %p141
        %p330 = pneg %p138
        %p331 = pneg %p162
        %p332 = pneg %p159
        %p333 = pneg %p183
        %p334 = pneg %p180
        %p335 = pneg %p209
        %p336 = pneg %p206
        %p337 = pneg %p235
        %p338 = pneg %p232
        %s339 = smul.u32 16, %s28
        %p340 = scmp.lt.s32.totalorder %s339, 15
        %s341 = scalar_select %p340, %s339, 15
        %s342 = smul.addr %s341, 8
        %s343 = scalar_lea.vmem %s0, %s342
        %s344 = smul.u32 16, %s28
        %s345 = smul.u32 16, %s28
        %p347 = scmp.eq.s32.totalorder %s29, 0
        // Predicated region
        $region57: #{tpu_custom_call.1} parent=47 // pred_check
          %p348 = pneg %p347
        $region58: #{tpu_custom_call.1} parent=47 // pred_check_branch
          %350 = sbr.rel (%p348) target = $region60
        $region59: #{tpu_custom_call.1} parent=47 // pred_region
          %v351 = vld [vmem:[%s343] sm:$0xff]
          %v352 = vld [vmem:[%s343 + $0x8] sm:$0xff]
          %v353 = vld [vmem:[%s343 + $0x10] sm:$0xff]
          %v354 = vld [vmem:[%s343 + $0x18] sm:$0xff]
          %v355 = vld [vmem:[%s343 + $0x20] sm:$0xff]
          %v356 = vld [vmem:[%s343 + $0x28] sm:$0xff]
          %v357 = vld [vmem:[%s343 + $0x30] sm:$0xff]
          %v358 = vld [vmem:[%s343 + $0x38] sm:$0xff]
          %v359 = vld [vmem:[%s343 + $0x40] sm:$0xff]
          %v360 = vld [vmem:[%s343 + $0x48] sm:$0xff]
          %v361 = vld [vmem:[%s343 + $0x50] sm:$0xff]
          %v362 = vld [vmem:[%s343 + $0x58] sm:$0xff]
          %v363 = vld [vmem:[%s343 + $0x60] sm:$0xff]
          %v364 = vld [vmem:[%s343 + $0x68] sm:$0xff]
          %v365 = vld [vmem:[%s343 + $0x70] sm:$0xff]
          %v366 = vld [vmem:[%s343 + $0x78] sm:$0xff]
          %v367 = vld [vmem:[%s1] sm:$0xff]
          %v368 = vld [vmem:[%s1 + $0x8] sm:$0xff]
          %v369 = vld [vmem:[%s1 + $0x10] sm:$0xff]
          %v370 = vld [vmem:[%s1 + $0x18] sm:$0xff]
          %v371 = vld [vmem:[%s1 + $0x20] sm:$0xff]
          %v372 = vld [vmem:[%s1 + $0x28] sm:$0xff]
          %v373 = vld [vmem:[%s1 + $0x30] sm:$0xff]
          %v374 = vld [vmem:[%s1 + $0x38] sm:$0xff]
          %v375 = vld [vmem:[%s1 + $0x40] sm:$0xff]
          %v376 = vld [vmem:[%s1 + $0x48] sm:$0xff]
          %v377 = vld [vmem:[%s1 + $0x50] sm:$0xff]
          %v378 = vld [vmem:[%s1 + $0x58] sm:$0xff]
          %v379 = vld [vmem:[%s1 + $0x60] sm:$0xff]
          %v380 = vld [vmem:[%s1 + $0x68] sm:$0xff]
          %v381 = vld [vmem:[%s1 + $0x70] sm:$0xff]
          %v382 = vld [vmem:[%s1 + $0x78] sm:$0xff]
          %v383 = vld [vmem:[%s2] sm:$0x1]
          %v385 = vlaneseq
          %v386 = vshrl.u32 %v385, 7
          %v387 = vsub.s32 0, %v386
          %v388 = vrot.slane %v383, %v387
          %390 = vmatprep.subr.mxu0 0.0
          %391 = vmatpush1.msra.mxu0 %v367
          %392 = vmatprep.subr.mxu0 0.0
          %393 = vmatpush1.msra.mxu0 %v368
          %394 = vmatprep.subr.mxu0 0.0
          %395 = vmatpush1.msra.mxu0 %v369
          %396 = vmatprep.subr.mxu0 0.0
          %397 = vmatpush1.msra.mxu0 %v370
          %398 = vmatprep.subr.mxu0 0.0
          %399 = vmatpush1.msra.mxu0 %v371
          %400 = vmatprep.subr.mxu0 0.0
          %401 = vmatpush1.msra.mxu0 %v372
          %402 = vmatprep.subr.mxu0 0.0
          %403 = vmatpush1.msra.mxu0 %v373
          %404 = vmatprep.subr.mxu0 0.0
          %405 = vmatpush1.msra.mxu0 %v374
          %406 = vmatprep.subr.mxu0 0.0
          %407 = vmatpush1.msra.mxu0 %v375
          %408 = vmatprep.subr.mxu0 0.0
          %409 = vmatpush1.msra.mxu0 %v376
          %410 = vmatprep.subr.mxu0 0.0
          %411 = vmatpush1.msra.mxu0 %v377
          %412 = vmatprep.subr.mxu0 0.0
          %413 = vmatpush1.msra.mxu0 %v378
          %414 = vmatprep.subr.mxu0 0.0
          %415 = vmatpush1.msra.mxu0 %v379
          %416 = vmatprep.subr.mxu0 0.0
          %417 = vmatpush1.msra.mxu0 %v380
          %418 = vmatprep.subr.mxu0 0.0
          %419 = vmatpush1.msra.mxu0 %v381
          %420 = vmatprep.subr.mxu0 0.0
          %421 = vmatpush1.msra.mxu0 %v382
          %422 = vmatprep.subr.mxu0 0.0
          %423 = vmatpush1.msra.mxu0 0.0
          %424 = vmatprep.subr.mxu0 0.0
          %425 = vmatpush1.msra.mxu0 0.0
          %426 = vmatprep.subr.mxu0 0.0
          %427 = vmatpush1.msra.mxu0 0.0
          %428 = vmatprep.subr.mxu0 0.0
          %429 = vmatpush1.msra.mxu0 0.0
          %430 = vmatprep.subr.mxu0 0.0
          %431 = vmatpush1.msra.mxu0 0.0
          %432 = vmatprep.subr.mxu0 0.0
          %433 = vmatpush1.msra.mxu0 0.0
          %434 = vmatprep.subr.mxu0 0.0
          %435 = vmatpush1.msra.mxu0 0.0
          %436 = vmatprep.subr.mxu0 0.0
          %437 = vmatpush1.msra.mxu0 0.0
          %438 = vmatprep.subr.mxu0 0.0
          %439 = vmatpush1.msra.mxu0 0.0
          %440 = vmatprep.subr.mxu0 0.0
          %441 = vmatpush1.msra.mxu0 0.0
          %442 = vmatprep.subr.mxu0 0.0
          %443 = vmatpush1.msra.mxu0 0.0
          %444 = vmatprep.subr.mxu0 0.0
          %445 = vmatpush1.msra.mxu0 0.0
          %446 = vmatprep.subr.mxu0 0.0
          %447 = vmatpush1.msra.mxu0 0.0
          %448 = vmatprep.subr.mxu0 0.0
          %449 = vmatpush1.msra.mxu0 0.0
          %450 = vmatprep.subr.mxu0 0.0
          %451 = vmatpush1.msra.mxu0 0.0
          %452 = vmatprep.subr.mxu0 0.0
          %453 = vmatpush1.msra.mxu0 0.0
          %454 = vmatprep.mubr.f32.mxu0 0.0
          %455 = vmatmul.mubr.f32.gmra.mrb[0].mxu0 %v351
          %v456 = vpop.f32.mrb[0].mxu0
          %v457 = vadd.f32 %v388, %v456
          %v458 = vpop.f32.mrb[0].mxu0
          %459 = vmatprep.mubr.f32.mxu0 0.0
          %460 = vmatmul.mubr.f32.gmra.mrb[0].mxu0 %v352
          %v461 = vpop.f32.mrb[0].mxu0
          %v462 = vadd.f32 %v388, %v461
          %v463 = vpop.f32.mrb[0].mxu0
          %464 = vmatprep.mubr.f32.mxu0 0.0
          %465 = vmatmul.mubr.f32.gmra.mrb[0].mxu0 %v353
          %v466 = vpop.f32.mrb[0].mxu0
          %v467 = vadd.f32 %v388, %v466
          %v468 = vpop.f32.mrb[0].mxu0
          %469 = vmatprep.mubr.f32.mxu0 0.0
          %470 = vmatmul.mubr.f32.gmra.mrb[0].mxu0 %v354
          %v471 = vpop.f32.mrb[0].mxu0
          %v472 = vadd.f32 %v388, %v471
          %v473 = vpop.f32.mrb[0].mxu0
          %474 = vmatprep.mubr.f32.mxu0 0.0
          %475 = vmatmul.mubr.f32.gmra.mrb[0].mxu0 %v355
          %v476 = vpop.f32.mrb[0].mxu0
          %v477 = vadd.f32 %v388, %v476
          %v478 = vpop.f32.mrb[0].mxu0
          %479 = vmatprep.mubr.f32.mxu0 0.0
          %480 = vmatmul.mubr.f32.gmra.mrb[0].mxu0 %v356
          %v481 = vpop.f32.mrb[0].mxu0
          %v482 = vadd.f32 %v388, %v481
          %v483 = vpop.f32.mrb[0].mxu0
          %484 = vmatprep.mubr.f32.mxu0 0.0
          %485 = vmatmul.mubr.f32.gmra.mrb[0].mxu0 %v357
          %v486 = vpop.f32.mrb[0].mxu0
          %v487 = vadd.f32 %v388, %v486
          %v488 = vpop.f32.mrb[0].mxu0
          %489 = vmatprep.mubr.f32.mxu0 0.0
          %490 = vmatmul.mubr.f32.gmra.mrb[0].mxu0 %v358
          %v491 = vpop.f32.mrb[0].mxu0
          %v492 = vadd.f32 %v388, %v491
          %v493 = vpop.f32.mrb[0].mxu0
          %494 = vmatprep.mubr.f32.mxu0 0.0
          %495 = vmatmul.mubr.f32.gmra.mrb[0].mxu0 %v359
          %v496 = vpop.f32.mrb[0].mxu0
          %v497 = vadd.f32 %v388, %v496
          %v498 = vpop.f32.mrb[0].mxu0
          %499 = vmatprep.mubr.f32.mxu0 0.0
          %500 = vmatmul.mubr.f32.gmra.mrb[0].mxu0 %v360
          %v501 = vpop.f32.mrb[0].mxu0
          %v502 = vadd.f32 %v388, %v501
          %v503 = vpop.f32.mrb[0].mxu0
          %504 = vmatprep.mubr.f32.mxu0 0.0
          %505 = vmatmul.mubr.f32.gmra.mrb[0].mxu0 %v361
          %v506 = vpop.f32.mrb[0].mxu0
          %v507 = vadd.f32 %v388, %v506
          %v508 = vpop.f32.mrb[0].mxu0
          %509 = vmatprep.mubr.f32.mxu0 0.0
          %510 = vmatmul.mubr.f32.gmra.mrb[0].mxu0 %v362
          %v511 = vpop.f32.mrb[0].mxu0
          %v512 = vadd.f32 %v388, %v511
          %v513 = vpop.f32.mrb[0].mxu0
          %514 = vmatprep.mubr.f32.mxu0 0.0
          %515 = vmatmul.mubr.f32.gmra.mrb[0].mxu0 %v363
          %v516 = vpop.f32.mrb[0].mxu0
          %v517 = vadd.f32 %v388, %v516
          %v518 = vpop.f32.mrb[0].mxu0
          %519 = vmatprep.mubr.f32.mxu0 0.0
          %520 = vmatmul.mubr.f32.gmra.mrb[0].mxu0 %v364
          %v521 = vpop.f32.mrb[0].mxu0
          %v522 = vadd.f32 %v388, %v521
          %v523 = vpop.f32.mrb[0].mxu0
          %524 = vmatprep.mubr.f32.mxu0 0.0
          %525 = vmatmul.mubr.f32.gmra.mrb[0].mxu0 %v365
          %v526 = vpop.f32.mrb[0].mxu0
          %v527 = vadd.f32 %v388, %v526
          %v528 = vpop.f32.mrb[0].mxu0
          %529 = vmatprep.mubr.f32.mxu0 0.0
          %530 = vmatmul.mubr.f32.gmra.mrb[0].mxu0 %v366
          %v531 = vpop.f32.mrb[0].mxu0
          %v532 = vadd.f32 %v388, %v531
          %v533 = vpop.f32.mrb[0].mxu0
          %534 = vdwg.mxu0
          %vm535 = vcmask 31744
          %v536 = vsel %vm535, %v457, -inf
          %537 = vmax.xlane.f32.xlu0 %v536
          %v538 = vpop.xlane.xlu0 %537
          %v539 = vsel %vm535, %v462, -inf
          %540 = vmax.xlane.f32.xlu0 %v539
          %v541 = vpop.xlane.xlu0 %540
          %v542 = vsel %vm535, %v467, -inf
          %543 = vmax.xlane.f32.xlu0 %v542
          %v544 = vpop.xlane.xlu0 %543
          %v545 = vsel %vm535, %v472, -inf
          %546 = vmax.xlane.f32.xlu0 %v545
          %v547 = vpop.xlane.xlu0 %546
          %v548 = vsel %vm535, %v477, -inf
          %549 = vmax.xlane.f32.xlu0 %v548
          %v550 = vpop.xlane.xlu0 %549
          %v551 = vsel %vm535, %v482, -inf
          %552 = vmax.xlane.f32.xlu0 %v551
          %v553 = vpop.xlane.xlu0 %552
          %v554 = vsel %vm535, %v487, -inf
          %555 = vmax.xlane.f32.xlu0 %v554
          %v556 = vpop.xlane.xlu0 %555
          %v557 = vsel %vm535, %v492, -inf
          %558 = vmax.xlane.f32.xlu0 %v557
          %v559 = vpop.xlane.xlu0 %558
          %v560 = vsel %vm535, %v497, -inf
          %561 = vmax.xlane.f32.xlu0 %v560
          %v562 = vpop.xlane.xlu0 %561
          %v563 = vsel %vm535, %v502, -inf
          %564 = vmax.xlane.f32.xlu0 %v563
          %v565 = vpop.xlane.xlu0 %564
          %v566 = vsel %vm535, %v507, -inf
          %567 = vmax.xlane.f32.xlu0 %v566
          %v568 = vpop.xlane.xlu0 %567
          %v569 = vsel %vm535, %v512, -inf
          %570 = vmax.xlane.f32.xlu0 %v569
          %v571 = vpop.xlane.xlu0 %570
          %v572 = vsel %vm535, %v517, -inf
          %573 = vmax.xlane.f32.xlu0 %v572
          %v574 = vpop.xlane.xlu0 %573
          %v575 = vsel %vm535, %v522, -inf
          %576 = vmax.xlane.f32.xlu0 %v575
          %v577 = vpop.xlane.xlu0 %576
          %v578 = vsel %vm535, %v527, -inf
          %579 = vmax.xlane.f32.xlu0 %v578
          %v580 = vpop.xlane.xlu0 %579
          %v581 = vsel %vm535, %v532, -inf
          %582 = vmax.xlane.f32.xlu0 %v581
          %v583 = vpop.xlane.xlu0 %582
          %v584 = vsub.f32 %v457, %v538
          %v585 = vsub.f32 %v462, %v541
          %v586 = vsub.f32 %v467, %v544
          %v587 = vsub.f32 %v472, %v547
          %v588 = vsub.f32 %v477, %v550
          %v589 = vsub.f32 %v482, %v553
          %v590 = vsub.f32 %v487, %v556
          %v591 = vsub.f32 %v492, %v559
          %v592 = vsub.f32 %v497, %v562
          %v593 = vsub.f32 %v502, %v565
          %v594 = vsub.f32 %v507, %v568
          %v595 = vsub.f32 %v512, %v571
          %v596 = vsub.f32 %v517, %v574
          %v597 = vsub.f32 %v522, %v577
          %v598 = vsub.f32 %v527, %v580
          %v599 = vsub.f32 %v532, %v583
          %v600 = vmul.f32 %v584, 1.442695
          %v601 = vpow.pop %v600
          %v602 = vmul.f32 %v585, 1.442695
          %v603 = vpow.pop %v602
          %v604 = vmul.f32 %v586, 1.442695
          %v605 = vpow.pop %v604
          %v606 = vmul.f32 %v587, 1.442695
          %v607 = vpow.pop %v606
          %v608 = vmul.f32 %v588, 1.442695
          %v609 = vpow.pop %v608
          %v610 = vmul.f32 %v589, 1.442695
          %v611 = vpow.pop %v610
          %v612 = vmul.f32 %v590, 1.442695
          %v613 = vpow.pop %v612
          %v614 = vmul.f32 %v591, 1.442695
          %v615 = vpow.pop %v614
          %v616 = vmul.f32 %v592, 1.442695
          %v617 = vpow.pop %v616
          %v618 = vmul.f32 %v593, 1.442695
          %v619 = vpow.pop %v618
          %v620 = vmul.f32 %v594, 1.442695
          %v621 = vpow.pop %v620
          %v622 = vmul.f32 %v595, 1.442695
          %v623 = vpow.pop %v622
          %v624 = vmul.f32 %v596, 1.442695
          %v625 = vpow.pop %v624
          %v626 = vmul.f32 %v597, 1.442695
          %v627 = vpow.pop %v626
          %v628 = vmul.f32 %v598, 1.442695
          %v629 = vpow.pop %v628
          %v630 = vmul.f32 %v599, 1.442695
          %v631 = vpow.pop %v630
          %v632 = vsel %vm535, %v601, 0.0
          %633 = vadd.xlane.f32.xlu0 %v632
          %v634 = vpop.xlane.xlu0 %633
          %v635 = vsel %vm535, %v603, 0.0
          %636 = vadd.xlane.f32.xlu0 %v635
          %v637 = vpop.xlane.xlu0 %636
          %v638 = vsel %vm535, %v605, 0.0
          %639 = vadd.xlane.f32.xlu0 %v638
          %v640 = vpop.xlane.xlu0 %639
          %v641 = vsel %vm535, %v607, 0.0
          %642 = vadd.xlane.f32.xlu0 %v641
          %v643 = vpop.xlane.xlu0 %642
          %v644 = vsel %vm535, %v609, 0.0
          %645 = vadd.xlane.f32.xlu0 %v644
          %v646 = vpop.xlane.xlu0 %645
          %v647 = vsel %vm535, %v611, 0.0
          %648 = vadd.xlane.f32.xlu0 %v647
          %v649 = vpop.xlane.xlu0 %648
          %v650 = vsel %vm535, %v613, 0.0
          %651 = vadd.xlane.f32.xlu0 %v650
          %v652 = vpop.xlane.xlu0 %651
          %v653 = vsel %vm535, %v615, 0.0
          %654 = vadd.xlane.f32.xlu0 %v653
          %v655 = vpop.xlane.xlu0 %654
          %v656 = vsel %vm535, %v617, 0.0
          %657 = vadd.xlane.f32.xlu0 %v656
          %v658 = vpop.xlane.xlu0 %657
          %v659 = vsel %vm535, %v619, 0.0
          %660 = vadd.xlane.f32.xlu0 %v659
          %v661 = vpop.xlane.xlu0 %660
          %v662 = vsel %vm535, %v621, 0.0
          %663 = vadd.xlane.f32.xlu0 %v662
          %v664 = vpop.xlane.xlu0 %663
          %v665 = vsel %vm535, %v623, 0.0
          %666 = vadd.xlane.f32.xlu0 %v665
          %v667 = vpop.xlane.xlu0 %666
          %v668 = vsel %vm535, %v625, 0.0
          %669 = vadd.xlane.f32.xlu0 %v668
          %v670 = vpop.xlane.xlu0 %669
          %v671 = vsel %vm535, %v627, 0.0
          %672 = vadd.xlane.f32.xlu0 %v671
          %v673 = vpop.xlane.xlu0 %672
          %v674 = vsel %vm535, %v629, 0.0
          %675 = vadd.xlane.f32.xlu0 %v674
          %v676 = vpop.xlane.xlu0 %675
          %v677 = vsel %vm535, %v631, 0.0
          %678 = vadd.xlane.f32.xlu0 %v677
          %v679 = vpop.xlane.xlu0 %678
          %v680 = vrcp.pop %v634
          %v681 = vmul.f32 %v601, %v680
          %v682 = vrcp.pop %v637
          %v683 = vmul.f32 %v603, %v682
          %v684 = vrcp.pop %v640
          %v685 = vmul.f32 %v605, %v684
          %v686 = vrcp.pop %v643
          %v687 = vmul.f32 %v607, %v686
          %v688 = vrcp.pop %v646
          %v689 = vmul.f32 %v609, %v688
          %v690 = vrcp.pop %v649
          %v691 = vmul.f32 %v611, %v690
          %v692 = vrcp.pop %v652
          %v693 = vmul.f32 %v613, %v692
          %v694 = vrcp.pop %v655
          %v695 = vmul.f32 %v615, %v694
          %v696 = vrcp.pop %v658
          %v697 = vmul.f32 %v617, %v696
          %v698 = vrcp.pop %v661
          %v699 = vmul.f32 %v619, %v698
          %v700 = vrcp.pop %v664
          %v701 = vmul.f32 %v621, %v700
          %v702 = vrcp.pop %v667
          %v703 = vmul.f32 %v623, %v702
          %v704 = vrcp.pop %v670
          %v705 = vmul.f32 %v625, %v704
          %v706 = vrcp.pop %v673
          %v707 = vmul.f32 %v627, %v706
          %v708 = vrcp.pop %v676
          %v709 = vmul.f32 %v629, %v708
          %v710 = vrcp.pop %v679
          %v711 = vmul.f32 %v631, %v710
          %v712 = vsel %vm535, %v681, -inf
          %713 = vmax.xlane.f32.xlu0 %v712
          %v714 = vpop.xlane.xlu0 %713
          %v715 = vsel %vm535, %v683, -inf
          %716 = vmax.xlane.f32.xlu0 %v715
          %v717 = vpop.xlane.xlu0 %716
          %v718 = vsel %vm535, %v685, -inf
          %719 = vmax.xlane.f32.xlu0 %v718
          %v720 = vpop.xlane.xlu0 %719
          %v721 = vsel %vm535, %v687, -inf
          %722 = vmax.xlane.f32.xlu0 %v721
          %v723 = vpop.xlane.xlu0 %722
          %v724 = vsel %vm535, %v689, -inf
          %725 = vmax.xlane.f32.xlu0 %v724
          %v726 = vpop.xlane.xlu0 %725
          %v727 = vsel %vm535, %v691, -inf
          %728 = vmax.xlane.f32.xlu0 %v727
          %v729 = vpop.xlane.xlu0 %728
          %v730 = vsel %vm535, %v693, -inf
          %731 = vmax.xlane.f32.xlu0 %v730
          %v732 = vpop.xlane.xlu0 %731
          %v733 = vsel %vm535, %v695, -inf
          %734 = vmax.xlane.f32.xlu0 %v733
          %v735 = vpop.xlane.xlu0 %734
          %v736 = vsel %vm535, %v697, -inf
          %737 = vmax.xlane.f32.xlu0 %v736
          %v738 = vpop.xlane.xlu0 %737
          %v739 = vsel %vm535, %v699, -inf
          %740 = vmax.xlane.f32.xlu0 %v739
          %v741 = vpop.xlane.xlu0 %740
          %v742 = vsel %vm535, %v701, -inf
          %743 = vmax.xlane.f32.xlu0 %v742
          %v744 = vpop.xlane.xlu0 %743
          %v745 = vsel %vm535, %v703, -inf
          %746 = vmax.xlane.f32.xlu0 %v745
          %v747 = vpop.xlane.xlu0 %746
          %v748 = vsel %vm535, %v705, -inf
          %749 = vmax.xlane.f32.xlu0 %v748
          %v750 = vpop.xlane.xlu0 %749
          %v751 = vsel %vm535, %v707, -inf
          %752 = vmax.xlane.f32.xlu0 %v751
          %v753 = vpop.xlane.xlu0 %752
          %v754 = vsel %vm535, %v709, -inf
          %755 = vmax.xlane.f32.xlu0 %v754
          %v756 = vpop.xlane.xlu0 %755
          %v757 = vsel %vm535, %v711, -inf
          %758 = vmax.xlane.f32.xlu0 %v757
          %v759 = vpop.xlane.xlu0 %758
          %vm760 = vcmp.lt.f32.partialorder %v681, %v714
          %vm761 = vcmp.lt.f32.partialorder %v683, %v717
          %vm762 = vcmp.lt.f32.partialorder %v685, %v720
          %vm763 = vcmp.lt.f32.partialorder %v687, %v723
          %vm764 = vcmp.lt.f32.partialorder %v689, %v726
          %vm765 = vcmp.lt.f32.partialorder %v691, %v729
          %vm766 = vcmp.lt.f32.partialorder %v693, %v732
          %vm767 = vcmp.lt.f32.partialorder %v695, %v735
          %vm768 = vcmp.lt.f32.partialorder %v697, %v738
          %vm769 = vcmp.lt.f32.partialorder %v699, %v741
          %vm770 = vcmp.lt.f32.partialorder %v701, %v744
          %vm771 = vcmp.lt.f32.partialorder %v703, %v747
          %vm772 = vcmp.lt.f32.partialorder %v705, %v750
          %vm773 = vcmp.lt.f32.partialorder %v707, %v753
          %vm774 = vcmp.lt.f32.partialorder %v709, %v756
          %vm775 = vcmp.lt.f32.partialorder %v711, %v759
          %v776 = vsel %vm760, %v681, -1.0
          %v777 = vsel %vm761, %v683, -1.0
          %v778 = vsel %vm762, %v685, -1.0
          %v779 = vsel %vm763, %v687, -1.0
          %v780 = vsel %vm764, %v689, -1.0
          %v781 = vsel %vm765, %v691, -1.0
          %v782 = vsel %vm766, %v693, -1.0
          %v783 = vsel %vm767, %v695, -1.0
          %v784 = vsel %vm768, %v697, -1.0
          %v785 = vsel %vm769, %v699, -1.0
          %v786 = vsel %vm770, %v701, -1.0
          %v787 = vsel %vm771, %v703, -1.0
          %v788 = vsel %vm772, %v705, -1.0
          %v789 = vsel %vm773, %v707, -1.0
          %v790 = vsel %vm774, %v709, -1.0
          %v791 = vsel %vm775, %v711, -1.0
          %v792 = vsel %vm535, %v776, -inf
          %793 = vmax.xlane.f32.xlu0 %v792
          %v794 = vpop.xlane.xlu0 %793
          %v795 = vsel %vm535, %v777, -inf
          %796 = vmax.xlane.f32.xlu0 %v795
          %v797 = vpop.xlane.xlu0 %796
          %v798 = vsel %vm535, %v778, -inf
          %799 = vmax.xlane.f32.xlu0 %v798
          %v800 = vpop.xlane.xlu0 %799
          %v801 = vsel %vm535, %v779, -inf
          %802 = vmax.xlane.f32.xlu0 %v801
          %v803 = vpop.xlane.xlu0 %802
          %v804 = vsel %vm535, %v780, -inf
          %805 = vmax.xlane.f32.xlu0 %v804
          %v806 = vpop.xlane.xlu0 %805
          %v807 = vsel %vm535, %v781, -inf
          %808 = vmax.xlane.f32.xlu0 %v807
          %v809 = vpop.xlane.xlu0 %808
          %v810 = vsel %vm535, %v782, -inf
          %811 = vmax.xlane.f32.xlu0 %v810
          %v812 = vpop.xlane.xlu0 %811
          %v813 = vsel %vm535, %v783, -inf
          %814 = vmax.xlane.f32.xlu0 %v813
          %v815 = vpop.xlane.xlu0 %814
          %v816 = vsel %vm535, %v784, -inf
          %817 = vmax.xlane.f32.xlu0 %v816
          %v818 = vpop.xlane.xlu0 %817
          %v819 = vsel %vm535, %v785, -inf
          %820 = vmax.xlane.f32.xlu0 %v819
          %v821 = vpop.xlane.xlu0 %820
          %v822 = vsel %vm535, %v786, -inf
          %823 = vmax.xlane.f32.xlu0 %v822
          %v824 = vpop.xlane.xlu0 %823
          %v825 = vsel %vm535, %v787, -inf
          %826 = vmax.xlane.f32.xlu0 %v825
          %v827 = vpop.xlane.xlu0 %826
          %v828 = vsel %vm535, %v788, -inf
          %829 = vmax.xlane.f32.xlu0 %v828
          %v830 = vpop.xlane.xlu0 %829
          %v831 = vsel %vm535, %v789, -inf
          %832 = vmax.xlane.f32.xlu0 %v831
          %v833 = vpop.xlane.xlu0 %832
          %v834 = vsel %vm535, %v790, -inf
          %835 = vmax.xlane.f32.xlu0 %v834
          %v836 = vpop.xlane.xlu0 %835
          %v837 = vsel %vm535, %v791, -inf
          %838 = vmax.xlane.f32.xlu0 %v837
          %v839 = vpop.xlane.xlu0 %838
          %vm840 = vcmp.ge.f32.partialorder %v681, %v794
          %vm841 = vcmp.ge.f32.partialorder %v683, %v797
          %vm842 = vcmp.ge.f32.partialorder %v685, %v800
          %vm843 = vcmp.ge.f32.partialorder %v687, %v803
          %vm844 = vcmp.ge.f32.partialorder %v689, %v806
          %vm845 = vcmp.ge.f32.partialorder %v691, %v809
          %vm846 = vcmp.ge.f32.partialorder %v693, %v812
          %vm847 = vcmp.ge.f32.partialorder %v695, %v815
          %vm848 = vcmp.ge.f32.partialorder %v697, %v818
          %vm849 = vcmp.ge.f32.partialorder %v699, %v821
          %vm850 = vcmp.ge.f32.partialorder %v701, %v824
          %vm851 = vcmp.ge.f32.partialorder %v703, %v827
          %vm852 = vcmp.ge.f32.partialorder %v705, %v830
          %vm853 = vcmp.ge.f32.partialorder %v707, %v833
          %vm854 = vcmp.ge.f32.partialorder %v709, %v836
          %vm855 = vcmp.ge.f32.partialorder %v711, %v839
          %v856 = vsel %vm840, %v681, 0.0
          %v857 = vsel %vm841, %v683, 0.0
          %v858 = vsel %vm842, %v685, 0.0
          %v859 = vsel %vm843, %v687, 0.0
          %v860 = vsel %vm844, %v689, 0.0
          %v861 = vsel %vm845, %v691, 0.0
          %v862 = vsel %vm846, %v693, 0.0
          %v863 = vsel %vm847, %v695, 0.0
          %v864 = vsel %vm848, %v697, 0.0
          %v865 = vsel %vm849, %v699, 0.0
          %v866 = vsel %vm850, %v701, 0.0
          %v867 = vsel %vm851, %v703, 0.0
          %v868 = vsel %vm852, %v705, 0.0
          %v869 = vsel %vm853, %v707, 0.0
          %v870 = vsel %vm854, %v709, 0.0
          %v871 = vsel %vm855, %v711, 0.0
          %872 = vst.msk [vmem:[#allocation2] sm:$0xff] %vm535, %v856
          %873 = vst.msk [vmem:[#allocation2 + $0x8] sm:$0xff] %vm535, %v857
          %874 = vst.msk [vmem:[#allocation2 + $0x10] sm:$0xff] %vm535, %v858
          %875 = vst.msk [vmem:[#allocation2 + $0x18] sm:$0xff] %vm535, %v859
          %876 = vst.msk [vmem:[#allocation2 + $0x20] sm:$0xff] %vm535, %v860
          %877 = vst.msk [vmem:[#allocation2 + $0x28] sm:$0xff] %vm535, %v861
          %878 = vst.msk [vmem:[#allocation2 + $0x30] sm:$0xff] %vm535, %v862
          %879 = vst.msk [vmem:[#allocation2 + $0x38] sm:$0xff] %vm535, %v863
          %880 = vst.msk [vmem:[#allocation2 + $0x40] sm:$0xff] %vm535, %v864
          %881 = vst.msk [vmem:[#allocation2 + $0x48] sm:$0xff] %vm535, %v865
          %882 = vst.msk [vmem:[#allocation2 + $0x50] sm:$0xff] %vm535, %v866
          %883 = vst.msk [vmem:[#allocation2 + $0x58] sm:$0xff] %vm535, %v867
          %884 = vst.msk [vmem:[#allocation2 + $0x60] sm:$0xff] %vm535, %v868
          %885 = vst.msk [vmem:[#allocation2 + $0x68] sm:$0xff] %vm535, %v869
          %886 = vst.msk [vmem:[#allocation2 + $0x70] sm:$0xff] %vm535, %v870
          %887 = vst.msk [vmem:[#allocation2 + $0x78] sm:$0xff] %vm535, %v871
          %v888 = vsel %vm535, %v681, 0.0
          %v889 = vsel %vm535, %v683, 0.0
          %v890 = vadd.f32 %v888, %v889
          %v891 = vsel %vm535, %v685, 0.0
          %v892 = vadd.f32 %v890, %v891
          %v893 = vsel %vm535, %v687, 0.0
          %v894 = vadd.f32 %v892, %v893
          %v895 = vsel %vm535, %v689, 0.0
          %v896 = vadd.f32 %v894, %v895
          %v897 = vsel %vm535, %v691, 0.0
          %v898 = vadd.f32 %v896, %v897
          %v899 = vsel %vm535, %v693, 0.0
          %v900 = vadd.f32 %v898, %v899
          %v901 = vsel %vm535, %v695, 0.0
          %v902 = vadd.f32 %v900, %v901
          %v903 = vsel %vm535, %v697, 0.0
          %v904 = vadd.f32 %v902, %v903
          %v905 = vsel %vm535, %v699, 0.0
          %v906 = vadd.f32 %v904, %v905
          %v907 = vsel %vm535, %v701, 0.0
          %v908 = vadd.f32 %v906, %v907
          %v909 = vsel %vm535, %v703, 0.0
          %v910 = vadd.f32 %v908, %v909
          %v911 = vsel %vm535, %v705, 0.0
          %v912 = vadd.f32 %v910, %v911
          %v913 = vsel %vm535, %v707, 0.0
          %v914 = vadd.f32 %v912, %v913
          %v915 = vsel %vm535, %v709, 0.0
          %v916 = vadd.f32 %v914, %v915
          %v917 = vsel %vm535, %v711, 0.0
          %v918 = vadd.f32 %v916, %v917
          %v919 = vrot.slane %v918, 4
          %v920 = vadd.f32 %v918, %v919
          %v921 = vrot.slane %v920, 2
          %v922 = vadd.f32 %v920, %v921
          %v923 = vrot.slane %v922, 1
          %v924 = vadd.f32 %v922, %v923
          %vm925 = vcmask 24576
          %926 = vst.msk [vmem:[#allocation9] sm:$0x1] %vm925, %v924
          %927 = vst [vmem:[#allocation8] sm:$0xff] 0.0
          %928 = vst [vmem:[#allocation8 + $0x8] sm:$0xff] 0.0
          %929 = vst [vmem:[#allocation8 + $0x10] sm:$0xff] 0.0
          %930 = vst [vmem:[#allocation8 + $0x18] sm:$0xff] 0.0
          %931 = vst [vmem:[#allocation8 + $0x20] sm:$0xff] 0.0
          %932 = vst [vmem:[#allocation8 + $0x28] sm:$0xff] 0.0
          %933 = vst [vmem:[#allocation8 + $0x30] sm:$0xff] 0.0
          %934 = vst [vmem:[#allocation8 + $0x38] sm:$0xff] 0.0
          %935 = vst [vmem:[#allocation8 + $0x40] sm:$0xff] 0.0
          %936 = vst [vmem:[#allocation8 + $0x48] sm:$0xff] 0.0
          %937 = vst [vmem:[#allocation8 + $0x50] sm:$0xff] 0.0
          %938 = vst [vmem:[#allocation8 + $0x58] sm:$0xff] 0.0
          %939 = vst [vmem:[#allocation8 + $0x60] sm:$0xff] 0.0
          %940 = vst [vmem:[#allocation8 + $0x68] sm:$0xff] 0.0
          %941 = vst [vmem:[#allocation8 + $0x70] sm:$0xff] 0.0
          %942 = vst [vmem:[#allocation8 + $0x78] sm:$0xff] 0.0
        $region60: #{tpu_custom_call.1} parent=47 // pred_fallthru
          _
        %v943 = vld [vmem:[%s343] sm:$0xff]
        %v944 = vld [vmem:[%s343 + $0x8] sm:$0xff]
        %v945 = vld [vmem:[%s343 + $0x10] sm:$0xff]
        %v946 = vld [vmem:[%s343 + $0x18] sm:$0xff]
        %v947 = vld [vmem:[%s343 + $0x20] sm:$0xff]
        %v948 = vld [vmem:[%s343 + $0x28] sm:$0xff]
        %v949 = vld [vmem:[%s343 + $0x30] sm:$0xff]
        %v950 = vld [vmem:[%s343 + $0x38] sm:$0xff]
        %v951 = vld [vmem:[%s343 + $0x40] sm:$0xff]
        %v952 = vld [vmem:[%s343 + $0x48] sm:$0xff]
        %v953 = vld [vmem:[%s343 + $0x50] sm:$0xff]
        %v954 = vld [vmem:[%s343 + $0x58] sm:$0xff]
        %v955 = vld [vmem:[%s343 + $0x60] sm:$0xff]
        %v956 = vld [vmem:[%s343 + $0x68] sm:$0xff]
        %v957 = vld [vmem:[%s343 + $0x70] sm:$0xff]
        %v958 = vld [vmem:[%s343 + $0x78] sm:$0xff]
        %v959 = vpack.c.bf16 %v944, %v943
        %v960 = vpack.c.bf16 %v946, %v945
        %v961 = vpack.c.bf16 %v948, %v947
        %v962 = vpack.c.bf16 %v950, %v949
        %v963 = vpack.c.bf16 %v952, %v951
        %v964 = vpack.c.bf16 %v954, %v953
        %v965 = vpack.c.bf16 %v956, %v955
        %v966 = vpack.c.bf16 %v958, %v957
        %s967 = smul.u32 %s29, 32
        %s968 = smul.addr %s967, 4
        %s969 = scalar_lea.vmem [#allocation3], %s968
        %v970 = vld [vmem:[%s969] sm:$0xff]
        %v971 = vld [vmem:[%s969 + $0x8] sm:$0xff]
        %v972 = vld [vmem:[%s969 + $0x10] sm:$0xff]
        %v973 = vld [vmem:[%s969 + $0x18] sm:$0xff]
        %v974 = vld [vmem:[%s969 + $0x20] sm:$0xff]
        %v975 = vld [vmem:[%s969 + $0x28] sm:$0xff]
        %v976 = vld [vmem:[%s969 + $0x30] sm:$0xff]
        %v977 = vld [vmem:[%s969 + $0x38] sm:$0xff]
        %v978 = vld [vmem:[%s969 + $0x40] sm:$0xff]
        %v979 = vld [vmem:[%s969 + $0x48] sm:$0xff]
        %v980 = vld [vmem:[%s969 + $0x50] sm:$0xff]
        %v981 = vld [vmem:[%s969 + $0x58] sm:$0xff]
        %v982 = vld [vmem:[%s969 + $0x60] sm:$0xff]
        %v983 = vld [vmem:[%s969 + $0x68] sm:$0xff]
        %v984 = vld [vmem:[%s969 + $0x70] sm:$0xff]
        %v985 = vld [vmem:[%s969 + $0x78] sm:$0xff]
        %s986 = smul.u32 %s29, 2
        %s987 = scalar_lea.vmem %s4, %s986
        %v988 = vld [vmem:[%s987] sm:$0x3]
        %v990 = vlaneseq
        %v991 = vshrl.u32 %v990, 7
        %v992 = vsub.s32 0, %v991
        %v993 = vrot.slane %v988, %v992
        %v994 = vlaneseq
        %v995 = vshrl.u32 %v994, 7
        %v996 = vsub.s32 1, %v995
        %v997 = vrot.slane %v988, %v996
        %v1016 = vunpack.c.l.b16 %v970
        %v1017 = vunpack.c.h.b16 %v970
        %v1018 = vunpack.c.l.b16 %v971
        %v1019 = vunpack.c.h.b16 %v971
        %v1020 = vunpack.c.l.b16 %v972
        %v1021 = vunpack.c.h.b16 %v972
        %v1022 = vunpack.c.l.b16 %v973
        %v1023 = vunpack.c.h.b16 %v973
        %v1024 = vunpack.c.l.b16 %v974
        %v1025 = vunpack.c.h.b16 %v974
        %v1026 = vunpack.c.l.b16 %v975
        %v1027 = vunpack.c.h.b16 %v975
        %v1028 = vunpack.c.l.b16 %v976
        %v1029 = vunpack.c.h.b16 %v976
        %v1030 = vunpack.c.l.b16 %v977
        %v1031 = vunpack.c.h.b16 %v977
        %v1032 = vunpack.c.l.b16 %v978
        %v1033 = vunpack.c.h.b16 %v978
        %v1034 = vunpack.c.l.b16 %v979
        %v1035 = vunpack.c.h.b16 %v979
        %v1036 = vunpack.c.l.b16 %v980
        %v1037 = vunpack.c.h.b16 %v980
        %v1038 = vunpack.c.l.b16 %v981
        %v1039 = vunpack.c.h.b16 %v981
        %v1040 = vunpack.c.l.b16 %v982
        %v1041 = vunpack.c.h.b16 %v982
        %v1042 = vunpack.c.l.b16 %v983
        %v1043 = vunpack.c.h.b16 %v983
        %v1044 = vunpack.c.l.b16 %v984
        %v1045 = vunpack.c.h.b16 %v984
        %v1046 = vunpack.c.l.b16 %v985
        %v1047 = vunpack.c.h.b16 %v985
        %v1048 = vpack.c.b16 %v1018, %v1016
        %v1049 = vpack.c.b16 %v1019, %v1017
        %v1050 = vpack.c.b16 %v1022, %v1020
        %v1051 = vpack.c.b16 %v1023, %v1021
        %v1052 = vpack.c.b16 %v1026, %v1024
        %v1053 = vpack.c.b16 %v1027, %v1025
        %v1054 = vpack.c.b16 %v1030, %v1028
        %v1055 = vpack.c.b16 %v1031, %v1029
        %v1056 = vpack.c.b16 %v1034, %v1032
        %v1057 = vpack.c.b16 %v1035, %v1033
        %v1058 = vpack.c.b16 %v1038, %v1036
        %v1059 = vpack.c.b16 %v1039, %v1037
        %v1060 = vpack.c.b16 %v1042, %v1040
        %v1061 = vpack.c.b16 %v1043, %v1041
        %v1062 = vpack.c.b16 %v1046, %v1044
        %v1063 = vpack.c.b16 %v1047, %v1045
        %1080 = vmatprep.subr.bf16.mxu0 %v1049
        %1081 = vmatpush1.bf16.msra.mxu0 %v1048
        %1082 = vmatprep.subr.bf16.mxu0 %v1051
        %1083 = vmatpush1.bf16.msra.mxu0 %v1050
        %1084 = vmatprep.subr.bf16.mxu0 %v1053
        %1085 = vmatpush1.bf16.msra.mxu0 %v1052
        %1086 = vmatprep.subr.bf16.mxu0 %v1055
        %1087 = vmatpush1.bf16.msra.mxu0 %v1054
        %1088 = vmatprep.subr.bf16.mxu0 %v1057
        %1089 = vmatpush1.bf16.msra.mxu0 %v1056
        %1090 = vmatprep.subr.bf16.mxu0 %v1059
        %1091 = vmatpush1.bf16.msra.mxu0 %v1058
        %1092 = vmatprep.subr.bf16.mxu0 %v1061
        %1093 = vmatpush1.bf16.msra.mxu0 %v1060
        %1094 = vmatprep.subr.bf16.mxu0 %v1063
        %1095 = vmatpush1.bf16.msra.mxu0 %v1062
        %1096 = vmatprep.subr.bf16.mxu0 0
        %1097 = vmatpush1.bf16.msra.mxu0 0
        %1098 = vmatprep.subr.bf16.mxu0 0
        %1099 = vmatpush1.bf16.msra.mxu0 0
        %1100 = vmatprep.subr.bf16.mxu0 0
        %1101 = vmatpush1.bf16.msra.mxu0 0
        %1102 = vmatprep.subr.bf16.mxu0 0
        %1103 = vmatpush1.bf16.msra.mxu0 0
        %1104 = vmatprep.subr.bf16.mxu0 0
        %1105 = vmatpush1.bf16.msra.mxu0 0
        %1106 = vmatprep.subr.bf16.mxu0 0
        %1107 = vmatpush1.bf16.msra.mxu0 0
        %1108 = vmatprep.subr.bf16.mxu0 0
        %1109 = vmatpush1.bf16.msra.mxu0 0
        %1110 = vmatprep.subr.bf16.mxu0 0
        %1111 = vmatpush1.bf16.msra.mxu0 0
        %1112 = vmatprep.mubr.bf16.mxu0 0
        %1113 = vmatmul.mubr.bf16.gmra.mrb[0].mxu0 %v959
        %v1114 = vpop.f32.mrb[0].mxu0
        %v1115 = vadd.f32 %v993, %v1114
        %v1116 = vpop.f32.mrb[0].mxu0
        %v1117 = vadd.f32 %v997, %v1116
        %v1118 = vpop.f32.mrb[0].mxu0
        %v1119 = vadd.f32 %v993, %v1118
        %v1120 = vpop.f32.mrb[0].mxu0
        %v1121 = vadd.f32 %v997, %v1120
        %1122 = vmatprep.mubr.bf16.mxu0 0
        %1123 = vmatmul.mubr.bf16.gmra.mrb[0].mxu0 %v960
        %v1124 = vpop.f32.mrb[0].mxu0
        %v1125 = vadd.f32 %v993, %v1124
        %v1126 = vpop.f32.mrb[0].mxu0
        %v1127 = vadd.f32 %v997, %v1126
        %v1128 = vpop.f32.mrb[0].mxu0
        %v1129 = vadd.f32 %v993, %v1128
        %v1130 = vpop.f32.mrb[0].mxu0
        %v1131 = vadd.f32 %v997, %v1130
        %1132 = vmatprep.mubr.bf16.mxu0 0
        %1133 = vmatmul.mubr.bf16.gmra.mrb[0].mxu0 %v961
        %v1134 = vpop.f32.mrb[0].mxu0
        %v1135 = vadd.f32 %v993, %v1134
        %v1136 = vpop.f32.mrb[0].mxu0
        %v1137 = vadd.f32 %v997, %v1136
        %v1138 = vpop.f32.mrb[0].mxu0
        %v1139 = vadd.f32 %v993, %v1138
        %v1140 = vpop.f32.mrb[0].mxu0
        %v1141 = vadd.f32 %v997, %v1140
        %1142 = vmatprep.mubr.bf16.mxu0 0
        %1143 = vmatmul.mubr.bf16.gmra.mrb[0].mxu0 %v962
        %v1144 = vpop.f32.mrb[0].mxu0
        %v1145 = vadd.f32 %v993, %v1144
        %v1146 = vpop.f32.mrb[0].mxu0
        %v1147 = vadd.f32 %v997, %v1146
        %v1148 = vpop.f32.mrb[0].mxu0
        %v1149 = vadd.f32 %v993, %v1148
        %v1150 = vpop.f32.mrb[0].mxu0
        %v1151 = vadd.f32 %v997, %v1150
        %1152 = vmatprep.mubr.bf16.mxu0 0
        %1153 = vmatmul.mubr.bf16.gmra.mrb[0].mxu0 %v963
        %v1154 = vpop.f32.mrb[0].mxu0
        %v1155 = vadd.f32 %v993, %v1154
        %v1156 = vpop.f32.mrb[0].mxu0
        %v1157 = vadd.f32 %v997, %v1156
        %v1158 = vpop.f32.mrb[0].mxu0
        %v1159 = vadd.f32 %v993, %v1158
        %v1160 = vpop.f32.mrb[0].mxu0
        %v1161 = vadd.f32 %v997, %v1160
        %1162 = vmatprep.mubr.bf16.mxu0 0
        %1163 = vmatmul.mubr.bf16.gmra.mrb[0].mxu0 %v964
        %v1164 = vpop.f32.mrb[0].mxu0
        %v1165 = vadd.f32 %v993, %v1164
        %v1166 = vpop.f32.mrb[0].mxu0
        %v1167 = vadd.f32 %v997, %v1166
        %v1168 = vpop.f32.mrb[0].mxu0
        %v1169 = vadd.f32 %v993, %v1168
        %v1170 = vpop.f32.mrb[0].mxu0
        %v1171 = vadd.f32 %v997, %v1170
        %1172 = vmatprep.mubr.bf16.mxu0 0
        %1173 = vmatmul.mubr.bf16.gmra.mrb[0].mxu0 %v965
        %v1174 = vpop.f32.mrb[0].mxu0
        %v1175 = vadd.f32 %v993, %v1174
        %v1176 = vpop.f32.mrb[0].mxu0
        %v1177 = vadd.f32 %v997, %v1176
        %v1178 = vpop.f32.mrb[0].mxu0
        %v1179 = vadd.f32 %v993, %v1178
        %v1180 = vpop.f32.mrb[0].mxu0
        %v1181 = vadd.f32 %v997, %v1180
        %1182 = vmatprep.mubr.bf16.mxu0 0
        %1183 = vmatmul.mubr.bf16.gmra.mrb[0].mxu0 %v966
        %v1184 = vpop.f32.mrb[0].mxu0
        %v1185 = vadd.f32 %v993, %v1184
        %v1186 = vpop.f32.mrb[0].mxu0
        %v1187 = vadd.f32 %v997, %v1186
        %v1188 = vpop.f32.mrb[0].mxu0
        %v1189 = vadd.f32 %v993, %v1188
        %v1190 = vpop.f32.mrb[0].mxu0
        %v1191 = vadd.f32 %v997, %v1190
        %1192 = vdwg.mxu0
        %v1193 = vmax.f32 %v1115, 0.0
        %v1194 = vmax.f32 %v1117, 0.0
        %v1195 = vmax.f32 %v1119, 0.0
        %v1196 = vmax.f32 %v1121, 0.0
        %v1197 = vmax.f32 %v1125, 0.0
        %v1198 = vmax.f32 %v1127, 0.0
        %v1199 = vmax.f32 %v1129, 0.0
        %v1200 = vmax.f32 %v1131, 0.0
        %v1201 = vmax.f32 %v1135, 0.0
        %v1202 = vmax.f32 %v1137, 0.0
        %v1203 = vmax.f32 %v1139, 0.0
        %v1204 = vmax.f32 %v1141, 0.0
        %v1205 = vmax.f32 %v1145, 0.0
        %v1206 = vmax.f32 %v1147, 0.0
        %v1207 = vmax.f32 %v1149, 0.0
        %v1208 = vmax.f32 %v1151, 0.0
        %v1209 = vmax.f32 %v1155, 0.0
        %v1210 = vmax.f32 %v1157, 0.0
        %v1211 = vmax.f32 %v1159, 0.0
        %v1212 = vmax.f32 %v1161, 0.0
        %v1213 = vmax.f32 %v1165, 0.0
        %v1214 = vmax.f32 %v1167, 0.0
        %v1215 = vmax.f32 %v1169, 0.0
        %v1216 = vmax.f32 %v1171, 0.0
        %v1217 = vmax.f32 %v1175, 0.0
        %v1218 = vmax.f32 %v1177, 0.0
        %v1219 = vmax.f32 %v1179, 0.0
        %v1220 = vmax.f32 %v1181, 0.0
        %v1221 = vmax.f32 %v1185, 0.0
        %v1222 = vmax.f32 %v1187, 0.0
        %v1223 = vmax.f32 %v1189, 0.0
        %v1224 = vmax.f32 %v1191, 0.0
        %v1225 = vpack.c.bf16 %v1195, %v1193
        %v1226 = vpack.c.bf16 %v1196, %v1194
        %v1227 = vpack.c.bf16 %v1199, %v1197
        %v1228 = vpack.c.bf16 %v1200, %v1198
        %v1229 = vpack.c.bf16 %v1203, %v1201
        %v1230 = vpack.c.bf16 %v1204, %v1202
        %v1231 = vpack.c.bf16 %v1207, %v1205
        %v1232 = vpack.c.bf16 %v1208, %v1206
        %v1233 = vpack.c.bf16 %v1211, %v1209
        %v1234 = vpack.c.bf16 %v1212, %v1210
        %v1235 = vpack.c.bf16 %v1215, %v1213
        %v1236 = vpack.c.bf16 %v1216, %v1214
        %v1237 = vpack.c.bf16 %v1219, %v1217
        %v1238 = vpack.c.bf16 %v1220, %v1218
        %v1239 = vpack.c.bf16 %v1223, %v1221
        %v1240 = vpack.c.bf16 %v1224, %v1222
        %s1241 = smul.addr %s967, 4
        %s1242 = scalar_lea.vmem [#allocation6], %s1241
        %v1243 = vld [vmem:[%s1242] sm:$0xf]
        %v1244 = vld [vmem:[%s1242 + $0x4] sm:$0xf]
        %v1245 = vld [vmem:[%s1242 + $0x8] sm:$0xf]
        %v1246 = vld [vmem:[%s1242 + $0xc] sm:$0xf]
        %v1247 = vld [vmem:[%s1242 + $0x10] sm:$0xf]
        %v1248 = vld [vmem:[%s1242 + $0x14] sm:$0xf]
        %v1249 = vld [vmem:[%s1242 + $0x18] sm:$0xf]
        %v1250 = vld [vmem:[%s1242 + $0x1c] sm:$0xf]
        %v1251 = vld [vmem:[%s1242 + $0x20] sm:$0xf]
        %v1252 = vld [vmem:[%s1242 + $0x24] sm:$0xf]
        %v1253 = vld [vmem:[%s1242 + $0x28] sm:$0xf]
        %v1254 = vld [vmem:[%s1242 + $0x2c] sm:$0xf]
        %v1255 = vld [vmem:[%s1242 + $0x30] sm:$0xf]
        %v1256 = vld [vmem:[%s1242 + $0x34] sm:$0xf]
        %v1257 = vld [vmem:[%s1242 + $0x38] sm:$0xf]
        %v1258 = vld [vmem:[%s1242 + $0x3c] sm:$0xf]
        %v1259 = vld [vmem:[%s1242 + $0x40] sm:$0xf]
        %v1260 = vld [vmem:[%s1242 + $0x44] sm:$0xf]
        %v1261 = vld [vmem:[%s1242 + $0x48] sm:$0xf]
        %v1262 = vld [vmem:[%s1242 + $0x4c] sm:$0xf]
        %v1263 = vld [vmem:[%s1242 + $0x50] sm:$0xf]
        %v1264 = vld [vmem:[%s1242 + $0x54] sm:$0xf]
        %v1265 = vld [vmem:[%s1242 + $0x58] sm:$0xf]
        %v1266 = vld [vmem:[%s1242 + $0x5c] sm:$0xf]
        %v1267 = vld [vmem:[%s1242 + $0x60] sm:$0xf]
        %v1268 = vld [vmem:[%s1242 + $0x64] sm:$0xf]
        %v1269 = vld [vmem:[%s1242 + $0x68] sm:$0xf]
        %v1270 = vld [vmem:[%s1242 + $0x6c] sm:$0xf]
        %v1271 = vld [vmem:[%s1242 + $0x70] sm:$0xf]
        %v1272 = vld [vmem:[%s1242 + $0x74] sm:$0xf]
        %v1273 = vld [vmem:[%s1242 + $0x78] sm:$0xf]
        %v1274 = vld [vmem:[%s1242 + $0x7c] sm:$0xf]
        %s1275 = scalar_lea.vmem %s6, %s29
        %v1276 = vld [vmem:[%s1275] sm:$0x1]
        %v1278 = vlaneseq
        %v1279 = vshrl.u32 %v1278, 7
        %v1280 = vsub.s32 0, %v1279
        %v1281 = vrot.slane %v1276, %v1280
        %v1315 = vunpack.c.l.b16 %v1243
        %v1316 = vunpack.c.l.b16 %v1244
        %v1317 = vunpack.c.l.b16 %v1245
        %v1318 = vunpack.c.l.b16 %v1246
        %v1319 = vunpack.c.l.b16 %v1247
        %v1320 = vunpack.c.l.b16 %v1248
        %v1321 = vunpack.c.l.b16 %v1249
        %v1322 = vunpack.c.l.b16 %v1250
        %v1323 = vunpack.c.l.b16 %v1251
        %v1324 = vunpack.c.l.b16 %v1252
        %v1325 = vunpack.c.l.b16 %v1253
        %v1326 = vunpack.c.l.b16 %v1254
        %v1327 = vunpack.c.l.b16 %v1255
        %v1328 = vunpack.c.l.b16 %v1256
        %v1329 = vunpack.c.l.b16 %v1257
        %v1330 = vunpack.c.l.b16 %v1258
        %v1331 = vunpack.c.l.b16 %v1259
        %v1332 = vunpack.c.l.b16 %v1260
        %v1333 = vunpack.c.l.b16 %v1261
        %v1334 = vunpack.c.l.b16 %v1262
        %v1335 = vunpack.c.l.b16 %v1263
        %v1336 = vunpack.c.l.b16 %v1264
        %v1337 = vunpack.c.l.b16 %v1265
        %v1338 = vunpack.c.l.b16 %v1266
        %v1339 = vunpack.c.l.b16 %v1267
        %v1340 = vunpack.c.l.b16 %v1268
        %v1341 = vunpack.c.l.b16 %v1269
        %v1342 = vunpack.c.l.b16 %v1270
        %v1343 = vunpack.c.l.b16 %v1271
        %v1344 = vunpack.c.l.b16 %v1272
        %v1345 = vunpack.c.l.b16 %v1273
        %v1346 = vunpack.c.l.b16 %v1274
        %v1347 = vpack.c.b16 %v1316, %v1315
        %v1348 = vpack.c.b16 %v1318, %v1317
        %v1349 = vpack.c.b16 %v1320, %v1319
        %v1350 = vpack.c.b16 %v1322, %v1321
        %v1351 = vpack.c.b16 %v1324, %v1323
        %v1352 = vpack.c.b16 %v1326, %v1325
        %v1353 = vpack.c.b16 %v1328, %v1327
        %v1354 = vpack.c.b16 %v1330, %v1329
        %v1355 = vpack.c.b16 %v1332, %v1331
        %v1356 = vpack.c.b16 %v1334, %v1333
        %v1357 = vpack.c.b16 %v1336, %v1335
        %v1358 = vpack.c.b16 %v1338, %v1337
        %v1359 = vpack.c.b16 %v1340, %v1339
        %v1360 = vpack.c.b16 %v1342, %v1341
        %v1361 = vpack.c.b16 %v1344, %v1343
        %v1362 = vpack.c.b16 %v1346, %v1345
        %1379 = vmatprep.subr.bf16.mxu0 0
        %1380 = vmatpush1.bf16.msra.mxu0 %v1347
        %1381 = vmatprep.subr.bf16.mxu0 0
        %1382 = vmatpush1.bf16.msra.mxu0 %v1348
        %1383 = vmatprep.subr.bf16.mxu0 0
        %1384 = vmatpush1.bf16.msra.mxu0 %v1349
        %1385 = vmatprep.subr.bf16.mxu0 0
        %1386 = vmatpush1.bf16.msra.mxu0 %v1350
        %1387 = vmatprep.subr.bf16.mxu0 0
        %1388 = vmatpush1.bf16.msra.mxu0 %v1351
        %1389 = vmatprep.subr.bf16.mxu0 0
        %1390 = vmatpush1.bf16.msra.mxu0 %v1352
        %1391 = vmatprep.subr.bf16.mxu0 0
        %1392 = vmatpush1.bf16.msra.mxu0 %v1353
        %1393 = vmatprep.subr.bf16.mxu0 0
        %1394 = vmatpush1.bf16.msra.mxu0 %v1354
        %1395 = vmatprep.subr.bf16.mxu0 0
        %1396 = vmatpush1.bf16.msra.mxu0 %v1355
        %1397 = vmatprep.subr.bf16.mxu0 0
        %1398 = vmatpush1.bf16.msra.mxu0 %v1356
        %1399 = vmatprep.subr.bf16.mxu0 0
        %1400 = vmatpush1.bf16.msra.mxu0 %v1357
        %1401 = vmatprep.subr.bf16.mxu0 0
        %1402 = vmatpush1.bf16.msra.mxu0 %v1358
        %1403 = vmatprep.subr.bf16.mxu0 0
        %1404 = vmatpush1.bf16.msra.mxu0 %v1359
        %1405 = vmatprep.subr.bf16.mxu0 0
        %1406 = vmatpush1.bf16.msra.mxu0 %v1360
        %1407 = vmatprep.subr.bf16.mxu0 0
        %1408 = vmatpush1.bf16.msra.mxu0 %v1361
        %1409 = vmatprep.subr.bf16.mxu0 0
        %1410 = vmatpush1.bf16.msra.mxu0 %v1362
        %1411 = vmatprep.mubr.bf16.mxu0 %v1226
        %1412 = vmatmul.mubr.bf16.gmra.mrb[0].mxu0 %v1225
        %v1413 = vpop.f32.mrb[0].mxu0
        %v1414 = vadd.f32 %v1281, %v1413
        %v1415 = vpop.f32.mrb[0].mxu0
        %v1416 = vpop.f32.mrb[0].mxu0
        %v1417 = vadd.f32 %v1281, %v1416
        %v1418 = vpop.f32.mrb[0].mxu0
        %1419 = vmatprep.mubr.bf16.mxu0 %v1228
        %1420 = vmatmul.mubr.bf16.gmra.mrb[0].mxu0 %v1227
        %v1421 = vpop.f32.mrb[0].mxu0
        %v1422 = vadd.f32 %v1281, %v1421
        %v1423 = vpop.f32.mrb[0].mxu0
        %v1424 = vpop.f32.mrb[0].mxu0
        %v1425 = vadd.f32 %v1281, %v1424
        %v1426 = vpop.f32.mrb[0].mxu0
        %1427 = vmatprep.mubr.bf16.mxu0 %v1230
        %1428 = vmatmul.mubr.bf16.gmra.mrb[0].mxu0 %v1229
        %v1429 = vpop.f32.mrb[0].mxu0
        %v1430 = vadd.f32 %v1281, %v1429
        %v1431 = vpop.f32.mrb[0].mxu0
        %v1432 = vpop.f32.mrb[0].mxu0
        %v1433 = vadd.f32 %v1281, %v1432
        %v1434 = vpop.f32.mrb[0].mxu0
        %1435 = vmatprep.mubr.bf16.mxu0 %v1232
        %1436 = vmatmul.mubr.bf16.gmra.mrb[0].mxu0 %v1231
        %v1437 = vpop.f32.mrb[0].mxu0
        %v1438 = vadd.f32 %v1281, %v1437
        %v1439 = vpop.f32.mrb[0].mxu0
        %v1440 = vpop.f32.mrb[0].mxu0
        %v1441 = vadd.f32 %v1281, %v1440
        %v1442 = vpop.f32.mrb[0].mxu0
        %1443 = vmatprep.mubr.bf16.mxu0 %v1234
        %1444 = vmatmul.mubr.bf16.gmra.mrb[0].mxu0 %v1233
        %v1445 = vpop.f32.mrb[0].mxu0
        %v1446 = vadd.f32 %v1281, %v1445
        %v1447 = vpop.f32.mrb[0].mxu0
        %v1448 = vpop.f32.mrb[0].mxu0
        %v1449 = vadd.f32 %v1281, %v1448
        %v1450 = vpop.f32.mrb[0].mxu0
        %1451 = vmatprep.mubr.bf16.mxu0 %v1236
        %1452 = vmatmul.mubr.bf16.gmra.mrb[0].mxu0 %v1235
        %v1453 = vpop.f32.mrb[0].mxu0
        %v1454 = vadd.f32 %v1281, %v1453
        %v1455 = vpop.f32.mrb[0].mxu0
        %v1456 = vpop.f32.mrb[0].mxu0
        %v1457 = vadd.f32 %v1281, %v1456
        %v1458 = vpop.f32.mrb[0].mxu0
        %1459 = vmatprep.mubr.bf16.mxu0 %v1238
        %1460 = vmatmul.mubr.bf16.gmra.mrb[0].mxu0 %v1237
        %v1461 = vpop.f32.mrb[0].mxu0
        %v1462 = vadd.f32 %v1281, %v1461
        %v1463 = vpop.f32.mrb[0].mxu0
        %v1464 = vpop.f32.mrb[0].mxu0
        %v1465 = vadd.f32 %v1281, %v1464
        %v1466 = vpop.f32.mrb[0].mxu0
        %1467 = vmatprep.mubr.bf16.mxu0 %v1240
        %1468 = vmatmul.mubr.bf16.gmra.mrb[0].mxu0 %v1239
        %v1469 = vpop.f32.mrb[0].mxu0
        %v1470 = vadd.f32 %v1281, %v1469
        %v1471 = vpop.f32.mrb[0].mxu0
        %v1472 = vpop.f32.mrb[0].mxu0
        %v1473 = vadd.f32 %v1281, %v1472
        %v1474 = vpop.f32.mrb[0].mxu0
        %1475 = vdwg.mxu0
        %v1476 = vlaneseq
        %v1477 = vand.u32 %v1476, 127
        %v1478 = vstv %s29
        %vm1479 = vcmp.eq.s32.totalorder %v1477, %v1478
        %v1480 = vld [vmem:[#allocation2] sm:$0xff]
        %v1481 = vld [vmem:[#allocation2 + $0x8] sm:$0xff]
        %v1482 = vld [vmem:[#allocation2 + $0x10] sm:$0xff]
        %v1483 = vld [vmem:[#allocation2 + $0x18] sm:$0xff]
        %v1484 = vld [vmem:[#allocation2 + $0x20] sm:$0xff]
        %v1485 = vld [vmem:[#allocation2 + $0x28] sm:$0xff]
        %v1486 = vld [vmem:[#allocation2 + $0x30] sm:$0xff]
        %v1487 = vld [vmem:[#allocation2 + $0x38] sm:$0xff]
        %v1488 = vld [vmem:[#allocation2 + $0x40] sm:$0xff]
        %v1489 = vld [vmem:[#allocation2 + $0x48] sm:$0xff]
        %v1490 = vld [vmem:[#allocation2 + $0x50] sm:$0xff]
        %v1491 = vld [vmem:[#allocation2 + $0x58] sm:$0xff]
        %v1492 = vld [vmem:[#allocation2 + $0x60] sm:$0xff]
        %v1493 = vld [vmem:[#allocation2 + $0x68] sm:$0xff]
        %v1494 = vld [vmem:[#allocation2 + $0x70] sm:$0xff]
        %v1495 = vld [vmem:[#allocation2 + $0x78] sm:$0xff]
        %v1496 = vsel %vm1479, %v1480, 0.0
        %v1497 = vsel %vm1479, %v1481, 0.0
        %v1498 = vsel %vm1479, %v1482, 0.0
        %v1499 = vsel %vm1479, %v1483, 0.0
        %v1500 = vsel %vm1479, %v1484, 0.0
        %v1501 = vsel %vm1479, %v1485, 0.0
        %v1502 = vsel %vm1479, %v1486, 0.0
        %v1503 = vsel %vm1479, %v1487, 0.0
        %v1504 = vsel %vm1479, %v1488, 0.0
        %v1505 = vsel %vm1479, %v1489, 0.0
        %v1506 = vsel %vm1479, %v1490, 0.0
        %v1507 = vsel %vm1479, %v1491, 0.0
        %v1508 = vsel %vm1479, %v1492, 0.0
        %v1509 = vsel %vm1479, %v1493, 0.0
        %v1510 = vsel %vm1479, %v1494, 0.0
        %v1511 = vsel %vm1479, %v1495, 0.0
        %vm1512 = vcmask 31744
        %v1513 = vsel %vm1512, %v1496, 0.0
        %1514 = vadd.xlane.f32.xlu0 %v1513
        %v1515 = vpop.xlane.xlu0 %1514
        %v1516 = vsel %vm1512, %v1497, 0.0
        %1517 = vadd.xlane.f32.xlu0 %v1516
        %v1518 = vpop.xlane.xlu0 %1517
        %v1519 = vsel %vm1512, %v1498, 0.0
        %1520 = vadd.xlane.f32.xlu0 %v1519
        %v1521 = vpop.xlane.xlu0 %1520
        %v1522 = vsel %vm1512, %v1499, 0.0
        %1523 = vadd.xlane.f32.xlu0 %v1522
        %v1524 = vpop.xlane.xlu0 %1523
        %v1525 = vsel %vm1512, %v1500, 0.0
        %1526 = vadd.xlane.f32.xlu0 %v1525
        %v1527 = vpop.xlane.xlu0 %1526
        %v1528 = vsel %vm1512, %v1501, 0.0
        %1529 = vadd.xlane.f32.xlu0 %v1528
        %v1530 = vpop.xlane.xlu0 %1529
        %v1531 = vsel %vm1512, %v1502, 0.0
        %1532 = vadd.xlane.f32.xlu0 %v1531
        %v1533 = vpop.xlane.xlu0 %1532
        %v1534 = vsel %vm1512, %v1503, 0.0
        %1535 = vadd.xlane.f32.xlu0 %v1534
        %v1536 = vpop.xlane.xlu0 %1535
        %v1537 = vsel %vm1512, %v1504, 0.0
        %1538 = vadd.xlane.f32.xlu0 %v1537
        %v1539 = vpop.xlane.xlu0 %1538
        %v1540 = vsel %vm1512, %v1505, 0.0
        %1541 = vadd.xlane.f32.xlu0 %v1540
        %v1542 = vpop.xlane.xlu0 %1541
        %v1543 = vsel %vm1512, %v1506, 0.0
        %1544 = vadd.xlane.f32.xlu0 %v1543
        %v1545 = vpop.xlane.xlu0 %1544
        %v1546 = vsel %vm1512, %v1507, 0.0
        %1547 = vadd.xlane.f32.xlu0 %v1546
        %v1548 = vpop.xlane.xlu0 %1547
        %v1549 = vsel %vm1512, %v1508, 0.0
        %1550 = vadd.xlane.f32.xlu0 %v1549
        %v1551 = vpop.xlane.xlu0 %1550
        %v1552 = vsel %vm1512, %v1509, 0.0
        %1553 = vadd.xlane.f32.xlu0 %v1552
        %v1554 = vpop.xlane.xlu0 %1553
        %v1555 = vsel %vm1512, %v1510, 0.0
        %1556 = vadd.xlane.f32.xlu0 %v1555
        %v1557 = vpop.xlane.xlu0 %1556
        %v1558 = vsel %vm1512, %v1511, 0.0
        %1559 = vadd.xlane.f32.xlu0 %v1558
        %v1560 = vpop.xlane.xlu0 %1559
        %v1561 = vld [vmem:[#allocation8] sm:$0xff]
        %v1562 = vld [vmem:[#allocation8 + $0x8] sm:$0xff]
        %v1563 = vld [vmem:[#allocation8 + $0x10] sm:$0xff]
        %v1564 = vld [vmem:[#allocation8 + $0x18] sm:$0xff]
        %v1565 = vld [vmem:[#allocation8 + $0x20] sm:$0xff]
        %v1566 = vld [vmem:[#allocation8 + $0x28] sm:$0xff]
        %v1567 = vld [vmem:[#allocation8 + $0x30] sm:$0xff]
        %v1568 = vld [vmem:[#allocation8 + $0x38] sm:$0xff]
        %v1569 = vld [vmem:[#allocation8 + $0x40] sm:$0xff]
        %v1570 = vld [vmem:[#allocation8 + $0x48] sm:$0xff]
        %v1571 = vld [vmem:[#allocation8 + $0x50] sm:$0xff]
        %v1572 = vld [vmem:[#allocation8 + $0x58] sm:$0xff]
        %v1573 = vld [vmem:[#allocation8 + $0x60] sm:$0xff]
        %v1574 = vld [vmem:[#allocation8 + $0x68] sm:$0xff]
        %v1575 = vld [vmem:[#allocation8 + $0x70] sm:$0xff]
        %v1576 = vld [vmem:[#allocation8 + $0x78] sm:$0xff]
        %v1577 = vmul.f32 %v1515, %v1414
        %v1578 = vmul.f32 %v1518, %v1417
        %v1579 = vmul.f32 %v1521, %v1422
        %v1580 = vmul.f32 %v1524, %v1425
        %v1581 = vmul.f32 %v1527, %v1430
        %v1582 = vmul.f32 %v1530, %v1433
        %v1583 = vmul.f32 %v1533, %v1438
        %v1584 = vmul.f32 %v1536, %v1441
        %v1585 = vmul.f32 %v1539, %v1446
        %v1586 = vmul.f32 %v1542, %v1449
        %v1587 = vmul.f32 %v1545, %v1454
        %v1588 = vmul.f32 %v1548, %v1457
        %v1589 = vmul.f32 %v1551, %v1462
        %v1590 = vmul.f32 %v1554, %v1465
        %v1591 = vmul.f32 %v1557, %v1470
        %v1592 = vmul.f32 %v1560, %v1473
        %v1593 = vadd.f32 %v1561, %v1577
        %v1594 = vadd.f32 %v1562, %v1578
        %v1595 = vadd.f32 %v1563, %v1579
        %v1596 = vadd.f32 %v1564, %v1580
        %v1597 = vadd.f32 %v1565, %v1581
        %v1598 = vadd.f32 %v1566, %v1582
        %v1599 = vadd.f32 %v1567, %v1583
        %v1600 = vadd.f32 %v1568, %v1584
        %v1601 = vadd.f32 %v1569, %v1585
        %v1602 = vadd.f32 %v1570, %v1586
        %v1603 = vadd.f32 %v1571, %v1587
        %v1604 = vadd.f32 %v1572, %v1588
        %v1605 = vadd.f32 %v1573, %v1589
        %v1606 = vadd.f32 %v1574, %v1590
        %v1607 = vadd.f32 %v1575, %v1591
        %v1608 = vadd.f32 %v1576, %v1592
        %1609 = vst [vmem:[#allocation8] sm:$0xff] %v1593
        %1610 = vst [vmem:[#allocation8 + $0x8] sm:$0xff] %v1594
        %1611 = vst [vmem:[#allocation8 + $0x10] sm:$0xff] %v1595
        %1612 = vst [vmem:[#allocation8 + $0x18] sm:$0xff] %v1596
        %1613 = vst [vmem:[#allocation8 + $0x20] sm:$0xff] %v1597
        %1614 = vst [vmem:[#allocation8 + $0x28] sm:$0xff] %v1598
        %1615 = vst [vmem:[#allocation8 + $0x30] sm:$0xff] %v1599
        %1616 = vst [vmem:[#allocation8 + $0x38] sm:$0xff] %v1600
        %1617 = vst [vmem:[#allocation8 + $0x40] sm:$0xff] %v1601
        %1618 = vst [vmem:[#allocation8 + $0x48] sm:$0xff] %v1602
        %1619 = vst [vmem:[#allocation8 + $0x50] sm:$0xff] %v1603
        %1620 = vst [vmem:[#allocation8 + $0x58] sm:$0xff] %v1604
        %1621 = vst [vmem:[#allocation8 + $0x60] sm:$0xff] %v1605
        %1622 = vst [vmem:[#allocation8 + $0x68] sm:$0xff] %v1606
        %1623 = vst [vmem:[#allocation8 + $0x70] sm:$0xff] %v1607
        %1624 = vst [vmem:[#allocation8 + $0x78] sm:$0xff] %v1608
        // Predicated region
        $region61: #{tpu_custom_call.1} parent=47 // pred_check
          %p1625 = pneg %p206
        $region62: #{tpu_custom_call.1} parent=47 // pred_check_branch
          %1627 = sbr.rel (%p1625) target = $region64
        $region63: #{tpu_custom_call.1} parent=47 // pred_region
          %s1628 = smul.u32 16, %s28
          %s1630 = ssub.s32 2048, 2048
          %1631 = vsyncadd [#allocation5], %s1630
          %s1632 = smul.addr %s1628, 128
          %s1633 = scalar_lea.hbm %s7, %s1632
          %s1634 = sshll.u32 [#allocation8], 4
          %s1635 = int_to_ptr.vmem [resolvable:$true] %s1634
          %1640 = dma.vmem_to_hbm [thread:$0]  %s1635, 2048, %s1633, [#allocation5], 128, 128, 8
        $region64: #{tpu_custom_call.1} parent=47 // pred_fallthru
          _
        // Predicated region
        $region65: #{tpu_custom_call.1} parent=47 // pred_check
          %p1641 = pneg %p232
        $region66: #{tpu_custom_call.1} parent=47 // pred_check_branch
          %1643 = sbr.rel (%p1641) target = $region68
        $region67: #{tpu_custom_call.1} parent=47 // pred_region
          %s1645 = ssub.s32 16, 16
          %1646 = vsyncadd [#allocation10], %s1645
          %s1647 = smul.addr %s28, 16
          %s1648 = scalar_lea.hbm %s8, %s1647
          %s1650 = sshll.u32 [#allocation9], 4
          %s1651 = int_to_ptr.vmem [resolvable:$true] %s1650
          %1653 = dma.vmem_to_hbm [thread:$0]  %s1651, 16, %s1648, [#allocation10]
        $region68: #{tpu_custom_call.1} parent=47 // pred_fallthru
          _
        // Predicated region
        $region69: #{tpu_custom_call.1} parent=47 // pred_check
          %p1654 = pneg %p206
        $region70: #{tpu_custom_call.1} parent=47 // pred_check_branch
          %1656 = sbr.rel (%p1654) target = $region72
        $region71: #{tpu_custom_call.1} parent=47 // pred_region
          %1657 = dma.done [#allocation5], 2048
        $region72: #{tpu_custom_call.1} parent=47 // pred_fallthru
          _
        // Predicated region
        $region73: #{tpu_custom_call.1} parent=47 // pred_check
          %p1658 = pneg %p232
        $region74: #{tpu_custom_call.1} parent=47 // pred_check_branch
          %1660 = sbr.rel (%p1658) target = $region76
        $region75: #{tpu_custom_call.1} parent=47 // pred_region
          %1661 = dma.done [#allocation10], 16
        $region76: #{tpu_custom_call.1} parent=47 // pred_fallthru
          _
      $region48: #{tpu_custom_call.1} parent=5 // pred_fallthru
        _
      %p1662 = scmp.le.s32.totalorder 2, %s19
      // Predicated region
      $region77: #{tpu_custom_call.1} parent=5 // pred_check
        %p1663 = pneg %p1662
      $region78: #{tpu_custom_call.1} parent=5 // pred_check_branch
        %1665 = sbr.rel (%p1663) target = $region80
      $region79: #{tpu_custom_call.1} parent=5 // pred_region
        %s1666 = ssub.s32 %s19, 2
      $region80: #{tpu_custom_call.1} parent=5 // pred_fallthru
        _
    $region6: #{tpu_custom_call.1} parent=1 // loop_footer
      %s23 = sadd.s32 1, %s19
    $region7: #{tpu_custom_call.1} parent=1 // loop_footer_branch
      %18 = sbr.rel target = $region3
    $region8: #{tpu_custom_call.1} parent=1 // loop_exit
      _
    %1667 = vsyncpa [#allocation4], 1
    %s1668 = scalar_lea.sflag [#allocation4], 1
    %1669 = vsyncpa %s1668, 1
    %1670 = vsyncpa [#allocation7], 1
    %1671 = vsyncpa [#allocation5], 1
    %s1672 = scalar_lea.sflag [#allocation5], 1
    %1673 = vsyncpa %s1672, 1
    %1674 = vsyncpa [#allocation10], 1

</llo_original>
